<compile_context>
chip_gen: v6e
topology: v6e:2x2x1
jax: 0.10.0
libtpu: 0.0.40
codegen_flags: <defaults>
</compile_context>

<pallas_src>
import jax
import jax.numpy as jnp
from jax.experimental import pallas as pl
from jax.experimental.pallas import tpu as pltpu  # noqa: F401

# ----------------------------- model dims -----------------------------------
B = 2                      # batch
C, H, W = 4, 16, 16        # src image (NCHW)
PATCH = 4
S = (H // PATCH) * (W // PATCH)     # 16 memory positions
P = C * PATCH * PATCH               # 64 patch dim
D = 32                     # d_model
T = 8                      # target sequence length (tgt = target[:, :-1])
V = 128                    # vocab size
FF = 64                    # feed-forward hidden
NEG_INF = -1e30

# rows of the packed bias / LayerNorm slab (shape (16, 128), zero-padded lanes)
R_BENC, R_BQKV, R_BO, R_CBQ, R_CBKV, R_CBO = 0, 1, 2, 3, 4, 5
R_B1, R_B2 = 6, 7
R_G1, R_BE1, R_G2, R_BE2, R_G3, R_BE3 = 8, 9, 10, 11, 12, 13
R_BOUT = 14
N_BIAS_ROWS = 16


# --------------------------- fused kernel ------------------------------------
def latex_fused_kernel(patches_ref, emb_ref, mask_ref,
                       w_enc_ref, w_self_ref, w_cross_ref,
                       w1_ref, w2_ref, wout_ref, bias_ref,
                       logits_ref):
    bias = bias_ref[...]                                  # (16, 128)

    def row(i, width):
        return bias[i:i + 1, 0:width]                     # (1, width) broadcast row

    def mm(a, w):
        return jnp.dot(a, w, preferred_element_type=jnp.float32)

    def layer_norm(v, g_row, b_row):
        mu = jnp.mean(v, axis=-1, keepdims=True)
        var = jnp.mean((v - mu) ** 2, axis=-1, keepdims=True)
        return (v - mu) * jax.lax.rsqrt(var + 1e-5) * row(g_row, D) + row(b_row, D)

    def softmax(s):
        m = jnp.max(s, axis=-1, keepdims=True)
        e = jnp.exp(s - m)
        return e * pl.reciprocal(jnp.sum(e, axis=-1, keepdims=True), approx=True)

    # ---- encoder (fused in): memory = patches @ w_enc + b_enc  -> (B*S, D) ----
    mem = mm(patches_ref[...], w_enc_ref[...]) + row(R_BENC, D)

    x = emb_ref[...]                                      # (B*T, D)
    scale = 1.0 / (float(D) ** 0.5)
    mask = mask_ref[...]                                  # (T, T) additive causal mask

    # ---- causal self-attention, fused [wq|wk|wv|wo] slab ----
    qkv = mm(x, w_self_ref[...]) + row(R_BQKV, 4 * D)     # (B*T, 128) = [q|k|v|.]
    ctx_parts = []
    for b in range(B):
        r = slice(b * T, (b + 1) * T)
        qb, kb, vb = qkv[r, 0:D], qkv[r, D:2 * D], qkv[r, 2 * D:3 * D]
        pb = softmax(mm(qb, kb.T) * scale + mask)         # (T, T)
        ctx_parts.append(mm(pb, vb))                      # (T, D)
    ctx = jnp.concatenate(ctx_parts, axis=0)              # (B*T, D)
    attn = mm(ctx, w_self_ref[...])[:, 3 * D:4 * D] + row(R_BO, D)
    x = layer_norm(x + attn, R_G1, R_BE1)

    # ---- cross-attention over encoder memory, fused [cwq|cwk|cwv|cwo] ----
    xq = mm(x, w_cross_ref[...])[:, 0:D] + row(R_CBQ, D)      # (B*T, D)
    mkv = mm(mem, w_cross_ref[...]) + row(R_CBKV, 4 * D)      # (B*S, 128) = [.|k|v|.]
    ctx_parts = []
    for b in range(B):
        qb = xq[b * T:(b + 1) * T, :]
        kb = mkv[b * S:(b + 1) * S, D:2 * D]
        vb = mkv[b * S:(b + 1) * S, 2 * D:3 * D]
        pb = softmax(mm(qb, kb.T) * scale)                    # (T, S)
        ctx_parts.append(mm(pb, vb))
    ctx = jnp.concatenate(ctx_parts, axis=0)
    attn = mm(ctx, w_cross_ref[...])[:, 3 * D:4 * D] + row(R_CBO, D)
    x = layer_norm(x + attn, R_G2, R_BE2)

    # ---- feed-forward ----
    h = jnp.maximum(mm(x, w1_ref[...]) + row(R_B1, FF), 0.0)
    x = layer_norm(x + mm(h, w2_ref[...]) + row(R_B2, D), R_G3, R_BE3)

    # ---- vocab projection (lane-dense output: V = 128 in the lane dim) ----
    logits_ref[...] = (mm(x, wout_ref[...]) + row(R_BOUT, V)).astype(logits_ref.dtype)


def latex_pallas(patches2d, emb2d, mask, params):
    # Single launch, no grid: everything fits trivially in VMEM (<200 KB).
    return pl.pallas_call(
        latex_fused_kernel,
        out_shape=jax.ShapeDtypeStruct((emb2d.shape[0], V), jnp.float32),
    )(patches2d, emb2d, mask,
      params["w_enc"], params["w_self"], params["w_cross"],
      params["w1"], params["w2"], params["wout"], params["bias_ln"])


# ------------------------------ glue / params --------------------------------
def patchify(src):
    # src: (B, C, H, W) NCHW  ->  (B, S, P) with P = C*PATCH*PATCH
    b, c, h, w = src.shape
    x = src.reshape(b, c, h // PATCH, PATCH, w // PATCH, PATCH)
    x = jnp.transpose(x, (0, 2, 4, 1, 3, 5))
    return x.reshape(b, (h // PATCH) * (w // PATCH), c * PATCH * PATCH)


def init_params(key):
    keys = jax.random.split(key, 16)
    norm = lambda k, shape, fan: (jax.random.normal(k, shape, jnp.float32)
                                  / (fan ** 0.5))

    # fused self-attn weights [wq|wk|wv|wo] -> (D, 4D) = (32, 128)
    w_self = jnp.concatenate(
        [norm(keys[3], (D, D), D), norm(keys[4], (D, D), D),
         norm(keys[5], (D, D), D), norm(keys[6], (D, D), D)], axis=1)
    # fused cross-attn weights [cwq|cwk|cwv|cwo] -> (D, 4D)
    w_cross = jnp.concatenate(
        [norm(keys[7], (D, D), D), norm(keys[8], (D, D), D),
         norm(keys[9], (D, D), D), norm(keys[10], (D, D), D)], axis=1)

    # one packed slab for every bias / LayerNorm parameter (zero-padded rows)
    bias = jnp.zeros((N_BIAS_ROWS, 128), jnp.float32)
    for r in (R_G1, R_G2, R_G3):
        bias = bias.at[r, :D].set(1.0)        # LayerNorm gammas = 1

    return {
        # encoder (patch embedding)
        "w_enc": norm(keys[0], (P, D), P),
        # token / positional embeddings
        "tok_emb": 0.02 * jax.random.normal(keys[1], (V, D), jnp.float32),
        "pos_emb": 0.02 * jax.random.normal(keys[2], (T, D), jnp.float32),
        # fused attention weight slabs
        "w_self": w_self,
        "w_cross": w_cross,
        # feed-forward
        "w1": norm(keys[11], (D, FF), D),
        "w2": norm(keys[12], (FF, D), FF),
        # vocab projection
        "wout": norm(keys[13], (D, V), D),
        # packed biases + LayerNorm params
        "bias_ln": bias,
    }


@jax.jit
def latex_model_forward(params, src, tgt):
    """Equivalent of LatexModel.forward(src, tgt, generate=False)."""
    # ---- patchify + embeddings (XLA glue) ----
    patches = patchify(src)                                    # (B, S, P)
    b, s, p = patches.shape
    t = tgt.shape[1]
    emb = params["tok_emb"][tgt] + params["pos_emb"][None, :t]  # (B, T, D)

    # additive causal mask == generate_square_subsequent_mask (built once,
    # constant-folded by XLA; the kernel is a single invocation so there is no
    # per-grid-step mask rebuild).
    idx = jnp.arange(t)
    mask = jnp.where(idx[None, :] <= idx[:, None], 0.0, NEG_INF).astype(jnp.float32)

    # ---- single fused Pallas kernel: encoder + decoder layer + vocab head ----
    logits = latex_pallas(
        patches.reshape(b * s, p), emb.reshape(b * t, D), mask, params
    ).reshape(b, t, V)                                         # (B, T, V) lane-dense

    # ---- return decoded.transpose(1, 2) ----
    return jnp.transpose(logits, (0, 2, 1))                    # (B, V, T)

    # TODO(synk): the autoregressive generate()/generate_batch() sampling loop
    # (data-dependent early-exit on EOS) is host-side control flow and is not
    # implemented as a Pallas kernel.


if __name__ == "__main__":
    key = jax.random.PRNGKey(0)
    k_param, k_src, k_tgt = jax.random.split(key, 3)

    params = init_params(k_param)
    src = jax.random.normal(k_src, (B, C, H, W), jnp.float32)      # NCHW image
    tgt = jax.random.randint(k_tgt, (B, T), 0, V, jnp.int32)       # target[:, :-1]

    out = latex_model_forward(params, src, tgt)
    out = jax.block_until_ready(out)

    assert out.shape == (B, V, T), out.shape
    assert jnp.all(jnp.isfinite(out))
    print("KERNEL_OK")
</pallas_src>

<mosaic_0001>
module attributes {stable_mosaic.version = 11 : i64} {
  func.func @latex_fused_kernel(%arg0: memref<32x64xf32, #tpu.memory_space<vmem>>, %arg1: memref<16x32xf32, #tpu.memory_space<vmem>>, %arg2: memref<8x8xf32, #tpu.memory_space<vmem>>, %arg3: memref<64x32xf32, #tpu.memory_space<vmem>>, %arg4: memref<32x128xf32, #tpu.memory_space<vmem>>, %arg5: memref<32x128xf32, #tpu.memory_space<vmem>>, %arg6: memref<32x64xf32, #tpu.memory_space<vmem>>, %arg7: memref<64x32xf32, #tpu.memory_space<vmem>>, %arg8: memref<32x128xf32, #tpu.memory_space<vmem>>, %arg9: memref<16x128xf32, #tpu.memory_space<vmem>>, %arg10: memref<16x128xf32, #tpu.memory_space<vmem>>) attributes {dimension_semantics = [], scalar_prefetch = 0 : i64, scratch_operands = 0 : i64, tpu.core_type = #tpu.core_type<tc>} {
    %c0 = arith.constant 0 : index
    %c0_0 = arith.constant 0 : index
    %0 = vector.load %arg9[%c0, %c0_0] : memref<16x128xf32, #tpu.memory_space<vmem>>, vector<16x128xf32>
    %c0_1 = arith.constant 0 : index
    %c0_2 = arith.constant 0 : index
    %1 = vector.load %arg0[%c0_1, %c0_2] : memref<32x64xf32, #tpu.memory_space<vmem>>, vector<32x64xf32>
    %c0_3 = arith.constant 0 : index
    %c0_4 = arith.constant 0 : index
    %2 = vector.load %arg3[%c0_3, %c0_4] : memref<64x32xf32, #tpu.memory_space<vmem>>, vector<64x32xf32>
    %cst = arith.constant dense<0.000000e+00> : vector<32x32xf32>
    %3 = tpu.matmul %1, %2, %cst {dimension_numbers = #tpu.dot_dimension_numbers<[1], [0], [0], [1], [0, 0, 1, 1], [], []>} : vector<32x64xf32>, vector<64x32xf32>, vector<32x32xf32> -> vector<32x32xf32>
    %4 = vector.extract_strided_slice %0 {offsets = [0, 0], sizes = [1, 32], strides = [1, 1]} : vector<16x128xf32> to vector<1x32xf32>
    %5 = vector.broadcast %4 : vector<1x32xf32> to vector<32x32xf32>
    %6 = arith.addf %3, %5 : vector<32x32xf32>
    %c0_5 = arith.constant 0 : index
    %c0_6 = arith.constant 0 : index
    %7 = vector.load %arg1[%c0_5, %c0_6] : memref<16x32xf32, #tpu.memory_space<vmem>>, vector<16x32xf32>
    %c0_7 = arith.constant 0 : index
    %c0_8 = arith.constant 0 : index
    %8 = vector.load %arg2[%c0_7, %c0_8] : memref<8x8xf32, #tpu.memory_space<vmem>>, vector<8x8xf32>
    %c0_9 = arith.constant 0 : index
    %c0_10 = arith.constant 0 : index
    %9 = vector.load %arg4[%c0_9, %c0_10] : memref<32x128xf32, #tpu.memory_space<vmem>>, vector<32x128xf32>
    %cst_11 = arith.constant dense<0.000000e+00> : vector<16x128xf32>
    %10 = tpu.matmul %7, %9, %cst_11 {dimension_numbers = #tpu.dot_dimension_numbers<[1], [0], [0], [1], [0, 0, 1, 1], [], []>} : vector<16x32xf32>, vector<32x128xf32>, vector<16x128xf32> -> vector<16x128xf32>
    %11 = vector.extract_strided_slice %0 {offsets = [1, 0], sizes = [1, 128], strides = [1, 1]} : vector<16x128xf32> to vector<1x128xf32>
    %12 = vector.broadcast %11 : vector<1x128xf32> to vector<16x128xf32>
    %13 = arith.addf %10, %12 : vector<16x128xf32>
    %14 = vector.extract_strided_slice %13 {offsets = [0, 0], sizes = [8, 32], strides = [1, 1]} : vector<16x128xf32> to vector<8x32xf32>
    %15 = vector.extract_strided_slice %13 {offsets = [0, 32], sizes = [8, 32], strides = [1, 1]} : vector<16x128xf32> to vector<8x32xf32>
    %16 = vector.extract_strided_slice %13 {offsets = [0, 64], sizes = [8, 32], strides = [1, 1]} : vector<16x128xf32> to vector<8x32xf32>
    %17 = tpu.transpose %15, [1, 0] : vector<8x32xf32> -> vector<32x8xf32>
    %cst_12 = arith.constant dense<0.000000e+00> : vector<8x8xf32>
    %18 = tpu.matmul %14, %17, %cst_12 {dimension_numbers = #tpu.dot_dimension_numbers<[1], [0], [0], [1], [0, 0, 1, 1], [], []>} : vector<8x32xf32>, vector<32x8xf32>, vector<8x8xf32> -> vector<8x8xf32>
    %cst_13 = arith.constant 0.176776692 : f32
    %19 = vector.broadcast %cst_13 : f32 to vector<8x8xf32>
    %20 = arith.mulf %18, %19 : vector<8x8xf32>
    %21 = arith.addf %20, %8 : vector<8x8xf32>
    %cst_14 = arith.constant dense<0xFF800000> : vector<8xf32>
    %22 = vector.multi_reduction <maximumf>, %21, %cst_14 [1] : vector<8x8xf32> to vector<8xf32>
    %23 = vector.shape_cast %22 : vector<8xf32> to vector<8x1xf32>
    %24 = vector.broadcast %23 : vector<8x1xf32> to vector<8x8xf32>
    %25 = arith.subf %21, %24 : vector<8x8xf32>
    %26 = math.exp %25 : vector<8x8xf32>
    %cst_15 = arith.constant dense<0.000000e+00> : vector<8xf32>
    %27 = vector.multi_reduction <add>, %26, %cst_15 [1] : vector<8x8xf32> to vector<8xf32>
    %28 = vector.shape_cast %27 : vector<8xf32> to vector<8x1xf32>
    %29 = tpu.reciprocal %28 {approx = true} : vector<8x1xf32> -> vector<8x1xf32>
    %30 = vector.broadcast %29 : vector<8x1xf32> to vector<8x8xf32>
    %31 = arith.mulf %26, %30 : vector<8x8xf32>
    %cst_16 = arith.constant dense<0.000000e+00> : vector<8x32xf32>
    %32 = tpu.matmul %31, %16, %cst_16 {dimension_numbers = #tpu.dot_dimension_numbers<[1], [0], [0], [1], [0, 0, 1, 1], [], []>} : vector<8x8xf32>, vector<8x32xf32>, vector<8x32xf32> -> vector<8x32xf32>
    %33 = vector.extract_strided_slice %13 {offsets = [8, 0], sizes = [8, 32], strides = [1, 1]} : vector<16x128xf32> to vector<8x32xf32>
    %34 = vector.extract_strided_slice %13 {offsets = [8, 32], sizes = [8, 32], strides = [1, 1]} : vector<16x128xf32> to vector<8x32xf32>
    %35 = vector.extract_strided_slice %13 {offsets = [8, 64], sizes = [8, 32], strides = [1, 1]} : vector<16x128xf32> to vector<8x32xf32>
    %36 = tpu.transpose %34, [1, 0] : vector<8x32xf32> -> vector<32x8xf32>
    %cst_17 = arith.constant dense<0.000000e+00> : vector<8x8xf32>
    %37 = tpu.matmul %33, %36, %cst_17 {dimension_numbers = #tpu.dot_dimension_numbers<[1], [0], [0], [1], [0, 0, 1, 1], [], []>} : vector<8x32xf32>, vector<32x8xf32>, vector<8x8xf32> -> vector<8x8xf32>
    %cst_18 = arith.constant 0.176776692 : f32
    %38 = vector.broadcast %cst_18 : f32 to vector<8x8xf32>
    %39 = arith.mulf %37, %38 : vector<8x8xf32>
    %40 = arith.addf %39, %8 : vector<8x8xf32>
    %cst_19 = arith.constant dense<0xFF800000> : vector<8xf32>
    %41 = vector.multi_reduction <maximumf>, %40, %cst_19 [1] : vector<8x8xf32> to vector<8xf32>
    %42 = vector.shape_cast %41 : vector<8xf32> to vector<8x1xf32>
    %43 = vector.broadcast %42 : vector<8x1xf32> to vector<8x8xf32>
    %44 = arith.subf %40, %43 : vector<8x8xf32>
    %45 = math.exp %44 : vector<8x8xf32>
    %cst_20 = arith.constant dense<0.000000e+00> : vector<8xf32>
    %46 = vector.multi_reduction <add>, %45, %cst_20 [1] : vector<8x8xf32> to vector<8xf32>
    %47 = vector.shape_cast %46 : vector<8xf32> to vector<8x1xf32>
    %48 = tpu.reciprocal %47 {approx = true} : vector<8x1xf32> -> vector<8x1xf32>
    %49 = vector.broadcast %48 : vector<8x1xf32> to vector<8x8xf32>
    %50 = arith.mulf %45, %49 : vector<8x8xf32>
    %cst_21 = arith.constant dense<0.000000e+00> : vector<8x32xf32>
    %51 = tpu.matmul %50, %35, %cst_21 {dimension_numbers = #tpu.dot_dimension_numbers<[1], [0], [0], [1], [0, 0, 1, 1], [], []>} : vector<8x8xf32>, vector<8x32xf32>, vector<8x32xf32> -> vector<8x32xf32>
    %52 = tpu.concatenate %32, %51 in 0 : vector<8x32xf32>, vector<8x32xf32> -> vector<16x32xf32>
    %c0_22 = arith.constant 0 : index
    %c0_23 = arith.constant 0 : index
    %53 = vector.load %arg4[%c0_22, %c0_23] : memref<32x128xf32, #tpu.memory_space<vmem>>, vector<32x128xf32>
    %cst_24 = arith.constant dense<0.000000e+00> : vector<16x128xf32>
    %54 = tpu.matmul %52, %53, %cst_24 {dimension_numbers = #tpu.dot_dimension_numbers<[1], [0], [0], [1], [0, 0, 1, 1], [], []>} : vector<16x32xf32>, vector<32x128xf32>, vector<16x128xf32> -> vector<16x128xf32>
    %55 = vector.extract_strided_slice %54 {offsets = [0, 96], sizes = [16, 32], strides = [1, 1]} : vector<16x128xf32> to vector<16x32xf32>
    %56 = vector.extract_strided_slice %0 {offsets = [2, 0], sizes = [1, 32], strides = [1, 1]} : vector<16x128xf32> to vector<1x32xf32>
    %57 = vector.broadcast %56 : vector<1x32xf32> to vector<16x32xf32>
    %58 = arith.addf %55, %57 : vector<16x32xf32>
    %59 = arith.addf %7, %58 : vector<16x32xf32>
    %cst_25 = arith.constant dense<0.000000e+00> : vector<16xf32>
    %60 = vector.multi_reduction <add>, %59, %cst_25 [1] : vector<16x32xf32> to vector<16xf32>
    %61 = vector.shape_cast %60 : vector<16xf32> to vector<16x1xf32>
    %cst_26 = arith.constant 3.200000e+01 : f32
    %62 = vector.broadcast %cst_26 : f32 to vector<16x1xf32>
    %63 = arith.divf %61, %62 : vector<16x1xf32>
    %64 = vector.broadcast %63 : vector<16x1xf32> to vector<16x32xf32>
    %65 = arith.subf %59, %64 : vector<16x32xf32>
    %66 = arith.mulf %65, %65 : vector<16x32xf32>
    %cst_27 = arith.constant dense<0.000000e+00> : vector<16xf32>
    %67 = vector.multi_reduction <add>, %66, %cst_27 [1] : vector<16x32xf32> to vector<16xf32>
    %68 = vector.shape_cast %67 : vector<16xf32> to vector<16x1xf32>
    %cst_28 = arith.constant 3.200000e+01 : f32
    %69 = vector.broadcast %cst_28 : f32 to vector<16x1xf32>
    %70 = arith.divf %68, %69 : vector<16x1xf32>
    %71 = vector.broadcast %63 : vector<16x1xf32> to vector<16x32xf32>
    %72 = arith.subf %59, %71 : vector<16x32xf32>
    %cst_29 = arith.constant 9.99999974E-6 : f32
    %73 = vector.broadcast %cst_29 : f32 to vector<16x1xf32>
    %74 = arith.addf %70, %73 : vector<16x1xf32>
    %75 = math.rsqrt %74 : vector<16x1xf32>
    %76 = vector.broadcast %75 : vector<16x1xf32> to vector<16x32xf32>
    %77 = arith.mulf %72, %76 : vector<16x32xf32>
    %78 = vector.extract_strided_slice %0 {offsets = [8, 0], sizes = [1, 32], strides = [1, 1]} : vector<16x128xf32> to vector<1x32xf32>
    %79 = vector.broadcast %78 : vector<1x32xf32> to vector<16x32xf32>
    %80 = arith.mulf %77, %79 : vector<16x32xf32>
    %81 = vector.extract_strided_slice %0 {offsets = [9, 0], sizes = [1, 32], strides = [1, 1]} : vector<16x128xf32> to vector<1x32xf32>
    %82 = vector.broadcast %81 : vector<1x32xf32> to vector<16x32xf32>
    %83 = arith.addf %80, %82 : vector<16x32xf32>
    %c0_30 = arith.constant 0 : index
    %c0_31 = arith.constant 0 : index
    %84 = vector.load %arg5[%c0_30, %c0_31] : memref<32x128xf32, #tpu.memory_space<vmem>>, vector<32x128xf32>
    %cst_32 = arith.constant dense<0.000000e+00> : vector<16x128xf32>
    %85 = tpu.matmul %83, %84, %cst_32 {dimension_numbers = #tpu.dot_dimension_numbers<[1], [0], [0], [1], [0, 0, 1, 1], [], []>} : vector<16x32xf32>, vector<32x128xf32>, vector<16x128xf32> -> vector<16x128xf32>
    %86 = vector.extract_strided_slice %85 {offsets = [0, 0], sizes = [16, 32], strides = [1, 1]} : vector<16x128xf32> to vector<16x32xf32>
    %87 = vector.extract_strided_slice %0 {offsets = [3, 0], sizes = [1, 32], strides = [1, 1]} : vector<16x128xf32> to vector<1x32xf32>
    %88 = vector.broadcast %87 : vector<1x32xf32> to vector<16x32xf32>
    %89 = arith.addf %86, %88 : vector<16x32xf32>
    %c0_33 = arith.constant 0 : index
    %c0_34 = arith.constant 0 : index
    %90 = vector.load %arg5[%c0_33, %c0_34] : memref<32x128xf32, #tpu.memory_space<vmem>>, vector<32x128xf32>
    %cst_35 = arith.constant dense<0.000000e+00> : vector<32x128xf32>
    %91 = tpu.matmul %6, %90, %cst_35 {dimension_numbers = #tpu.dot_dimension_numbers<[1], [0], [0], [1], [0, 0, 1, 1], [], []>} : vector<32x32xf32>, vector<32x128xf32>, vector<32x128xf32> -> vector<32x128xf32>
    %92 = vector.extract_strided_slice %0 {offsets = [4, 0], sizes = [1, 128], strides = [1, 1]} : vector<16x128xf32> to vector<1x128xf32>
    %93 = vector.broadcast %92 : vector<1x128xf32> to vector<32x128xf32>
    %94 = arith.addf %91, %93 : vector<32x128xf32>
    %95 = vector.extract_strided_slice %89 {offsets = [0, 0], sizes = [8, 32], strides = [1, 1]} : vector<16x32xf32> to vector<8x32xf32>
    %96 = vector.extract_strided_slice %94 {offsets = [0, 32], sizes = [16, 32], strides = [1, 1]} : vector<32x128xf32> to vector<16x32xf32>
    %97 = vector.extract_strided_slice %94 {offsets = [0, 64], sizes = [16, 32], strides = [1, 1]} : vector<32x128xf32> to vector<16x32xf32>
    %98 = tpu.transpose %96, [1, 0] : vector<16x32xf32> -> vector<32x16xf32>
    %cst_36 = arith.constant dense<0.000000e+00> : vector<8x16xf32>
    %99 = tpu.matmul %95, %98, %cst_36 {dimension_numbers = #tpu.dot_dimension_numbers<[1], [0], [0], [1], [0, 0, 1, 1], [], []>} : vector<8x32xf32>, vector<32x16xf32>, vector<8x16xf32> -> vector<8x16xf32>
    %cst_37 = arith.constant 0.176776692 : f32
    %100 = vector.broadcast %cst_37 : f32 to vector<8x16xf32>
    %101 = arith.mulf %99, %100 : vector<8x16xf32>
    %cst_38 = arith.constant dense<0xFF800000> : vector<8xf32>
    %102 = vector.multi_reduction <maximumf>, %101, %cst_38 [1] : vector<8x16xf32> to vector<8xf32>
    %103 = vector.shape_cast %102 : vector<8xf32> to vector<8x1xf32>
    %104 = vector.broadcast %103 : vector<8x1xf32> to vector<8x16xf32>
    %105 = arith.subf %101, %104 : vector<8x16xf32>
    %106 = math.exp %105 : vector<8x16xf32>
    %cst_39 = arith.constant dense<0.000000e+00> : vector<8xf32>
    %107 = vector.multi_reduction <add>, %106, %cst_39 [1] : vector<8x16xf32> to vector<8xf32>
    %108 = vector.shape_cast %107 : vector<8xf32> to vector<8x1xf32>
    %109 = tpu.reciprocal %108 {approx = true} : vector<8x1xf32> -> vector<8x1xf32>
    %110 = vector.broadcast %109 : vector<8x1xf32> to vector<8x16xf32>
    %111 = arith.mulf %106, %110 : vector<8x16xf32>
    %cst_40 = arith.constant dense<0.000000e+00> : vector<8x32xf32>
    %112 = tpu.matmul %111, %97, %cst_40 {dimension_numbers = #tpu.dot_dimension_numbers<[1], [0], [0], [1], [0, 0, 1, 1], [], []>} : vector<8x16xf32>, vector<16x32xf32>, vector<8x32xf32> -> vector<8x32xf32>
    %113 = vector.extract_strided_slice %89 {offsets = [8, 0], sizes = [8, 32], strides = [1, 1]} : vector<16x32xf32> to vector<8x32xf32>
    %114 = vector.extract_strided_slice %94 {offsets = [16, 32], sizes = [16, 32], strides = [1, 1]} : vector<32x128xf32> to vector<16x32xf32>
    %115 = vector.extract_strided_slice %94 {offsets = [16, 64], sizes = [16, 32], strides = [1, 1]} : vector<32x128xf32> to vector<16x32xf32>
    %116 = tpu.transpose %114, [1, 0] : vector<16x32xf32> -> vector<32x16xf32>
    %cst_41 = arith.constant dense<0.000000e+00> : vector<8x16xf32>
    %117 = tpu.matmul %113, %116, %cst_41 {dimension_numbers = #tpu.dot_dimension_numbers<[1], [0], [0], [1], [0, 0, 1, 1], [], []>} : vector<8x32xf32>, vector<32x16xf32>, vector<8x16xf32> -> vector<8x16xf32>
    %cst_42 = arith.constant 0.176776692 : f32
    %118 = vector.broadcast %cst_42 : f32 to vector<8x16xf32>
    %119 = arith.mulf %117, %118 : vector<8x16xf32>
    %cst_43 = arith.constant dense<0xFF800000> : vector<8xf32>
    %120 = vector.multi_reduction <maximumf>, %119, %cst_43 [1] : vector<8x16xf32> to vector<8xf32>
    %121 = vector.shape_cast %120 : vector<8xf32> to vector<8x1xf32>
    %122 = vector.broadcast %121 : vector<8x1xf32> to vector<8x16xf32>
    %123 = arith.subf %119, %122 : vector<8x16xf32>
    %124 = math.exp %123 : vector<8x16xf32>
    %cst_44 = arith.constant dense<0.000000e+00> : vector<8xf32>
    %125 = vector.multi_reduction <add>, %124, %cst_44 [1] : vector<8x16xf32> to vector<8xf32>
    %126 = vector.shape_cast %125 : vector<8xf32> to vector<8x1xf32>
    %127 = tpu.reciprocal %126 {approx = true} : vector<8x1xf32> -> vector<8x1xf32>
    %128 = vector.broadcast %127 : vector<8x1xf32> to vector<8x16xf32>
    %129 = arith.mulf %124, %128 : vector<8x16xf32>
    %cst_45 = arith.constant dense<0.000000e+00> : vector<8x32xf32>
    %130 = tpu.matmul %129, %115, %cst_45 {dimension_numbers = #tpu.dot_dimension_numbers<[1], [0], [0], [1], [0, 0, 1, 1], [], []>} : vector<8x16xf32>, vector<16x32xf32>, vector<8x32xf32> -> vector<8x32xf32>
    %131 = tpu.concatenate %112, %130 in 0 : vector<8x32xf32>, vector<8x32xf32> -> vector<16x32xf32>
    %c0_46 = arith.constant 0 : index
    %c0_47 = arith.constant 0 : index
    %132 = vector.load %arg5[%c0_46, %c0_47] : memref<32x128xf32, #tpu.memory_space<vmem>>, vector<32x128xf32>
    %cst_48 = arith.constant dense<0.000000e+00> : vector<16x128xf32>
    %133 = tpu.matmul %131, %132, %cst_48 {dimension_numbers = #tpu.dot_dimension_numbers<[1], [0], [0], [1], [0, 0, 1, 1], [], []>} : vector<16x32xf32>, vector<32x128xf32>, vector<16x128xf32> -> vector<16x128xf32>
    %134 = vector.extract_strided_slice %133 {offsets = [0, 96], sizes = [16, 32], strides = [1, 1]} : vector<16x128xf32> to vector<16x32xf32>
    %135 = vector.extract_strided_slice %0 {offsets = [5, 0], sizes = [1, 32], strides = [1, 1]} : vector<16x128xf32> to vector<1x32xf32>
    %136 = vector.broadcast %135 : vector<1x32xf32> to vector<16x32xf32>
    %137 = arith.addf %134, %136 : vector<16x32xf32>
    %138 = arith.addf %83, %137 : vector<16x32xf32>
    %cst_49 = arith.constant dense<0.000000e+00> : vector<16xf32>
    %139 = vector.multi_reduction <add>, %138, %cst_49 [1] : vector<16x32xf32> to vector<16xf32>
    %140 = vector.shape_cast %139 : vector<16xf32> to vector<16x1xf32>
    %cst_50 = arith.constant 3.200000e+01 : f32
    %141 = vector.broadcast %cst_50 : f32 to vector<16x1xf32>
    %142 = arith.divf %140, %141 : vector<16x1xf32>
    %143 = vector.broadcast %142 : vector<16x1xf32> to vector<16x32xf32>
    %144 = arith.subf %138, %143 : vector<16x32xf32>
    %145 = arith.mulf %144, %144 : vector<16x32xf32>
    %cst_51 = arith.constant dense<0.000000e+00> : vector<16xf32>
    %146 = vector.multi_reduction <add>, %145, %cst_51 [1] : vector<16x32xf32> to vector<16xf32>
    %147 = vector.shape_cast %146 : vector<16xf32> to vector<16x1xf32>
    %cst_52 = arith.constant 3.200000e+01 : f32
    %148 = vector.broadcast %cst_52 : f32 to vector<16x1xf32>
    %149 = arith.divf %147, %148 : vector<16x1xf32>
    %150 = vector.broadcast %142 : vector<16x1xf32> to vector<16x32xf32>
    %151 = arith.subf %138, %150 : vector<16x32xf32>
    %cst_53 = arith.constant 9.99999974E-6 : f32
    %152 = vector.broadcast %cst_53 : f32 to vector<16x1xf32>
    %153 = arith.addf %149, %152 : vector<16x1xf32>
    %154 = math.rsqrt %153 : vector<16x1xf32>
    %155 = vector.broadcast %154 : vector<16x1xf32> to vector<16x32xf32>
    %156 = arith.mulf %151, %155 : vector<16x32xf32>
    %157 = vector.extract_strided_slice %0 {offsets = [10, 0], sizes = [1, 32], strides = [1, 1]} : vector<16x128xf32> to vector<1x32xf32>
    %158 = vector.broadcast %157 : vector<1x32xf32> to vector<16x32xf32>
    %159 = arith.mulf %156, %158 : vector<16x32xf32>
    %160 = vector.extract_strided_slice %0 {offsets = [11, 0], sizes = [1, 32], strides = [1, 1]} : vector<16x128xf32> to vector<1x32xf32>
    %161 = vector.broadcast %160 : vector<1x32xf32> to vector<16x32xf32>
    %162 = arith.addf %159, %161 : vector<16x32xf32>
    %c0_54 = arith.constant 0 : index
    %c0_55 = arith.constant 0 : index
    %163 = vector.load %arg6[%c0_54, %c0_55] : memref<32x64xf32, #tpu.memory_space<vmem>>, vector<32x64xf32>
    %cst_56 = arith.constant dense<0.000000e+00> : vector<16x64xf32>
    %164 = tpu.matmul %162, %163, %cst_56 {dimension_numbers = #tpu.dot_dimension_numbers<[1], [0], [0], [1], [0, 0, 1, 1], [], []>} : vector<16x32xf32>, vector<32x64xf32>, vector<16x64xf32> -> vector<16x64xf32>
    %165 = vector.extract_strided_slice %0 {offsets = [6, 0], sizes = [1, 64], strides = [1, 1]} : vector<16x128xf32> to vector<1x64xf32>
    %166 = vector.broadcast %165 : vector<1x64xf32> to vector<16x64xf32>
    %167 = arith.addf %164, %166 : vector<16x64xf32>
    %cst_57 = arith.constant 0.000000e+00 : f32
    %168 = vector.broadcast %cst_57 : f32 to vector<16x64xf32>
    %169 = arith.maximumf %167, %168 : vector<16x64xf32>
    %c0_58 = arith.constant 0 : index
    %c0_59 = arith.constant 0 : index
    %170 = vector.load %arg7[%c0_58, %c0_59] : memref<64x32xf32, #tpu.memory_space<vmem>>, vector<64x32xf32>
    %cst_60 = arith.constant dense<0.000000e+00> : vector<16x32xf32>
    %171 = tpu.matmul %169, %170, %cst_60 {dimension_numbers = #tpu.dot_dimension_numbers<[1], [0], [0], [1], [0, 0, 1, 1], [], []>} : vector<16x64xf32>, vector<64x32xf32>, vector<16x32xf32> -> vector<16x32xf32>
    %172 = arith.addf %162, %171 : vector<16x32xf32>
    %173 = vector.extract_strided_slice %0 {offsets = [7, 0], sizes = [1, 32], strides = [1, 1]} : vector<16x128xf32> to vector<1x32xf32>
    %174 = vector.broadcast %173 : vector<1x32xf32> to vector<16x32xf32>
    %175 = arith.addf %172, %174 : vector<16x32xf32>
    %cst_61 = arith.constant dense<0.000000e+00> : vector<16xf32>
    %176 = vector.multi_reduction <add>, %175, %cst_61 [1] : vector<16x32xf32> to vector<16xf32>
    %177 = vector.shape_cast %176 : vector<16xf32> to vector<16x1xf32>
    %cst_62 = arith.constant 3.200000e+01 : f32
    %178 = vector.broadcast %cst_62 : f32 to vector<16x1xf32>
    %179 = arith.divf %177, %178 : vector<16x1xf32>
    %180 = vector.broadcast %179 : vector<16x1xf32> to vector<16x32xf32>
    %181 = arith.subf %175, %180 : vector<16x32xf32>
    %182 = arith.mulf %181, %181 : vector<16x32xf32>
    %cst_63 = arith.constant dense<0.000000e+00> : vector<16xf32>
    %183 = vector.multi_reduction <add>, %182, %cst_63 [1] : vector<16x32xf32> to vector<16xf32>
    %184 = vector.shape_cast %183 : vector<16xf32> to vector<16x1xf32>
    %cst_64 = arith.constant 3.200000e+01 : f32
    %185 = vector.broadcast %cst_64 : f32 to vector<16x1xf32>
    %186 = arith.divf %184, %185 : vector<16x1xf32>
    %187 = vector.broadcast %179 : vector<16x1xf32> to vector<16x32xf32>
    %188 = arith.subf %175, %187 : vector<16x32xf32>
    %cst_65 = arith.constant 9.99999974E-6 : f32
    %189 = vector.broadcast %cst_65 : f32 to vector<16x1xf32>
    %190 = arith.addf %186, %189 : vector<16x1xf32>
    %191 = math.rsqrt %190 : vector<16x1xf32>
    %192 = vector.broadcast %191 : vector<16x1xf32> to vector<16x32xf32>
    %193 = arith.mulf %188, %192 : vector<16x32xf32>
    %194 = vector.extract_strided_slice %0 {offsets = [12, 0], sizes = [1, 32], strides = [1, 1]} : vector<16x128xf32> to vector<1x32xf32>
    %195 = vector.broadcast %194 : vector<1x32xf32> to vector<16x32xf32>
    %196 = arith.mulf %193, %195 : vector<16x32xf32>
    %197 = vector.extract_strided_slice %0 {offsets = [13, 0], sizes = [1, 32], strides = [1, 1]} : vector<16x128xf32> to vector<1x32xf32>
    %198 = vector.broadcast %197 : vector<1x32xf32> to vector<16x32xf32>
    %199 = arith.addf %196, %198 : vector<16x32xf32>
    %c0_66 = arith.constant 0 : index
    %c0_67 = arith.constant 0 : index
    %200 = vector.load %arg8[%c0_66, %c0_67] : memref<32x128xf32, #tpu.memory_space<vmem>>, vector<32x128xf32>
    %cst_68 = arith.constant dense<0.000000e+00> : vector<16x128xf32>
    %201 = tpu.matmul %199, %200, %cst_68 {dimension_numbers = #tpu.dot_dimension_numbers<[1], [0], [0], [1], [0, 0, 1, 1], [], []>} : vector<16x32xf32>, vector<32x128xf32>, vector<16x128xf32> -> vector<16x128xf32>
    %202 = vector.extract_strided_slice %0 {offsets = [14, 0], sizes = [1, 128], strides = [1, 1]} : vector<16x128xf32> to vector<1x128xf32>
    %203 = vector.broadcast %202 : vector<1x128xf32> to vector<16x128xf32>
    %204 = arith.addf %201, %203 : vector<16x128xf32>
    %c0_69 = arith.constant 0 : index
    %c0_70 = arith.constant 0 : index
    %205 = vector.load %arg10[%c0_69, %c0_70] : memref<16x128xf32, #tpu.memory_space<vmem>>, vector<16x128xf32>
    tpu.vector_store %arg10[%c0_69, %c0_70], %204 {strides = array<i32>} : memref<16x128xf32, #tpu.memory_space<vmem>>, vector<16x128xf32>,
    return
  }
}

</mosaic_0001>

<llo_original>
// kernel: latex_model_forward.1
$region0: #{latex_model_forward.1}
  #allocation0 [shape = 'u32[]', space=smem, size = 0x4, offset = 0x4, fixed_abs, tag = 'smem constant byte address 0x4 - core index']
  #allocation1 [shape = 'u32[144,128]{1,0:T(1,128)}', space=vmem, size = 0x12000, scoped, tag = 'internal scratch']
  %s0 = inlined_call_operand.vmem [shape: f32[32,64], index: 0, kind: input, shape index: {}]
  %s1 = inlined_call_operand.vmem [shape: f32[16,32], index: 1, kind: input, shape index: {}]
  %s2 = inlined_call_operand.vmem [shape: f32[8,8], index: 2, kind: input, shape index: {}]
  %s3 = inlined_call_operand.vmem [shape: f32[64,32], index: 3, kind: input, shape index: {}]
  %s4 = inlined_call_operand.vmem [shape: f32[32,128], index: 4, kind: input, shape index: {}]
  %s5 = inlined_call_operand.vmem [shape: f32[32,128], index: 5, kind: input, shape index: {}]
  %s6 = inlined_call_operand.vmem [shape: f32[32,64], index: 6, kind: input, shape index: {}]
  %s7 = inlined_call_operand.vmem [shape: f32[64,32], index: 7, kind: input, shape index: {}]
  %s8 = inlined_call_operand.vmem [shape: f32[32,128], index: 8, kind: input, shape index: {}]
  %s9 = inlined_call_operand.vmem [shape: f32[16,128], index: 9, kind: input, shape index: {}]
  %s10 = inlined_call_operand.hbm [shape: f32[16,128], index: 10, kind: output, shape index: {}]
  %s11 = sld [smem:[#allocation0]]
  $region50: #{latex_model_forward.1} parent=0
    _
  %s13 = ssub.s32 1, %s11
  %s14 = scalar_select 0, %s13, %s11
  $region1: #{latex_model_forward.1} parent=0
    #allocation2 [shape = 'u8[8192]{0}', space=vmem, size = 0x2000, scoped, tag = 'output window, operand 0, single buffered']
    #allocation3 [shape = 's32[1]{0}', space=sflag, size = 0x4, scoped, tag = 'scoped memory for latex_model_forward.1']
    %15 = vsyncpa [#allocation3], 0
    // Predicated region
    $region2: #{latex_model_forward.1} parent=1 // pred_check
      _
    $region3: #{latex_model_forward.1} parent=1 // pred_check_branch
      %17 = sbr.rel (0) target = $region5
    $region4: #{latex_model_forward.1} parent=1 // pred_region
      _
    $region5: #{latex_model_forward.1} parent=1 // pred_fallthru
      _
    // Predicated region
    $region6: #{latex_model_forward.1} parent=1 // pred_check
      _
    $region7: #{latex_model_forward.1} parent=1 // pred_check_branch
      %19 = sbr.rel (0) target = $region9
    $region8: #{latex_model_forward.1} parent=1 // pred_region
      _
    $region9: #{latex_model_forward.1} parent=1 // pred_fallthru
      _
    // Predicated region
    $region10: #{latex_model_forward.1} parent=1 // pred_check
      _
    $region11: #{latex_model_forward.1} parent=1 // pred_check_branch
      %21 = sbr.rel (0) target = $region13
    $region12: #{latex_model_forward.1} parent=1 // pred_region
      _
    $region13: #{latex_model_forward.1} parent=1 // pred_fallthru
      _
    // Predicated region
    $region14: #{latex_model_forward.1} parent=1 // pred_check
      _
    $region15: #{latex_model_forward.1} parent=1 // pred_check_branch
      %23 = sbr.rel (0) target = $region17
    $region16: #{latex_model_forward.1} parent=1 // pred_region
      _
    $region17: #{latex_model_forward.1} parent=1 // pred_fallthru
      _
    // Predicated region
    $region18: #{latex_model_forward.1} parent=1 // pred_check
      _
    $region19: #{latex_model_forward.1} parent=1 // pred_check_branch
      %25 = sbr.rel (0) target = $region21
    $region20: #{latex_model_forward.1} parent=1 // pred_region
      _
    $region21: #{latex_model_forward.1} parent=1 // pred_fallthru
      _
    // Predicated region
    $region22: #{latex_model_forward.1} parent=1 // pred_check
      _
    $region23: #{latex_model_forward.1} parent=1 // pred_check_branch
      %27 = sbr.rel (0) target = $region25
    $region24: #{latex_model_forward.1} parent=1 // pred_region
      _
    $region25: #{latex_model_forward.1} parent=1 // pred_fallthru
      _
    // Predicated region
    $region26: #{latex_model_forward.1} parent=1 // pred_check
      _
    $region27: #{latex_model_forward.1} parent=1 // pred_check_branch
      %29 = sbr.rel (0) target = $region29
    $region28: #{latex_model_forward.1} parent=1 // pred_region
      _
    $region29: #{latex_model_forward.1} parent=1 // pred_fallthru
      _
    // Predicated region
    $region30: #{latex_model_forward.1} parent=1 // pred_check
      _
    $region31: #{latex_model_forward.1} parent=1 // pred_check_branch
      %31 = sbr.rel (0) target = $region33
    $region32: #{latex_model_forward.1} parent=1 // pred_region
      _
    $region33: #{latex_model_forward.1} parent=1 // pred_fallthru
      _
    // Predicated region
    $region34: #{latex_model_forward.1} parent=1 // pred_check
      _
    $region35: #{latex_model_forward.1} parent=1 // pred_check_branch
      %33 = sbr.rel (0) target = $region37
    $region36: #{latex_model_forward.1} parent=1 // pred_region
      _
    $region37: #{latex_model_forward.1} parent=1 // pred_fallthru
      _
    // Predicated region
    $region38: #{latex_model_forward.1} parent=1 // pred_check
      _
    $region39: #{latex_model_forward.1} parent=1 // pred_check_branch
      %35 = sbr.rel (0) target = $region41
    $region40: #{latex_model_forward.1} parent=1 // pred_region
      _
    $region41: #{latex_model_forward.1} parent=1 // pred_fallthru
      _
    %v36 = vld [vmem:[%s9] sm:$0xff]
    %v37 = vld [vmem:[%s9 + $0x8] sm:$0xff]
    %v38 = vld [vmem:[%s0] sm:$0xff]
    %v39 = vld [vmem:[%s0 + $0x8] sm:$0xff]
    %v40 = vld [vmem:[%s0 + $0x10] sm:$0xff]
    %v41 = vld [vmem:[%s0 + $0x18] sm:$0xff]
    %v42 = vld [vmem:[%s3] sm:$0xff]
    %v43 = vld [vmem:[%s3 + $0x8] sm:$0xff]
    %v44 = vld [vmem:[%s3 + $0x10] sm:$0xff]
    %v45 = vld [vmem:[%s3 + $0x18] sm:$0xff]
    %v46 = vld [vmem:[%s3 + $0x20] sm:$0xff]
    %v47 = vld [vmem:[%s3 + $0x28] sm:$0xff]
    %v48 = vld [vmem:[%s3 + $0x30] sm:$0xff]
    %v49 = vld [vmem:[%s3 + $0x38] sm:$0xff]
    %v50 = vlaneseq
    %v51 = vshrl.u32 %v50, 7
    %v52 = vsub.s32 0, %v51
    %v53 = vrot.slane %v36, %v52
    %vm54 = vcmask 523264
    %v56 = vsel %vm54, %v38, 0
    %v59 = vsel %vm54, %v39, 0
    %v62 = vsel %vm54, %v40, 0
    %v65 = vsel %vm54, %v41, 0
    %67 = vmatprep.subr.mxu0 0.0
    %68 = vmatpush1.msra.mxu0 0.0
    %69 = vmatprep.subr.mxu0 0.0
    %70 = vmatpush1.msra.mxu0 0.0
    %71 = vmatprep.subr.mxu0 0.0
    %72 = vmatpush1.msra.mxu0 0.0
    %73 = vmatprep.subr.mxu0 0.0
    %74 = vmatpush1.msra.mxu0 0.0
    %75 = vmatprep.subr.mxu0 0.0
    %76 = vmatpush1.msra.mxu0 0.0
    %77 = vmatprep.subr.mxu0 0.0
    %78 = vmatpush1.msra.mxu0 0.0
    %79 = vmatprep.subr.mxu0 0.0
    %80 = vmatpush1.msra.mxu0 0.0
    %81 = vmatprep.subr.mxu0 0.0
    %82 = vmatpush1.msra.mxu0 0.0
    %83 = vmatprep.subr.mxu0 0.0
    %84 = vmatpush1.msra.mxu0 %v49
    %85 = vmatprep.subr.mxu0 0.0
    %86 = vmatpush1.msra.mxu0 %v48
    %87 = vmatprep.subr.mxu0 0.0
    %88 = vmatpush1.msra.mxu0 %v47
    %89 = vmatprep.subr.mxu0 0.0
    %90 = vmatpush1.msra.mxu0 %v46
    %91 = vmatprep.subr.mxu0 0.0
    %92 = vmatpush1.msra.mxu0 %v45
    %93 = vmatprep.subr.mxu0 0.0
    %94 = vmatpush1.msra.mxu0 %v44
    %95 = vmatprep.subr.mxu0 0.0
    %96 = vmatpush1.msra.mxu0 %v43
    %97 = vmatprep.subr.mxu0 0.0
    %98 = vmatpush1.msra.mxu0 %v42
    %99 = vmatprep.subr.mxu0 0.0
    %100 = vmatpush2.msra.mxu0 0.0
    %101 = vmatprep.subr.mxu0 0.0
    %102 = vmatpush2.msra.mxu0 0.0
    %103 = vmatprep.subr.mxu0 0.0
    %104 = vmatpush2.msra.mxu0 0.0
    %105 = vmatprep.subr.mxu0 0.0
    %106 = vmatpush2.msra.mxu0 0.0
    %107 = vmatprep.subr.mxu0 0.0
    %108 = vmatpush2.msra.mxu0 0.0
    %109 = vmatprep.subr.mxu0 0.0
    %110 = vmatpush2.msra.mxu0 0.0
    %111 = vmatprep.subr.mxu0 0.0
    %112 = vmatpush2.msra.mxu0 0.0
    %113 = vmatprep.subr.mxu0 0.0
    %114 = vmatpush2.msra.mxu0 0.0
    %115 = vmatprep.subr.mxu0 0.0
    %116 = vmatpush2.msra.mxu0 0.0
    %117 = vmatprep.subr.mxu0 0.0
    %118 = vmatpush2.msra.mxu0 0.0
    %119 = vmatprep.subr.mxu0 0.0
    %120 = vmatpush2.msra.mxu0 0.0
    %121 = vmatprep.subr.mxu0 0.0
    %122 = vmatpush2.msra.mxu0 0.0
    %123 = vmatprep.subr.mxu0 0.0
    %124 = vmatpush2.msra.mxu0 0.0
    %125 = vmatprep.subr.mxu0 0.0
    %126 = vmatpush2.msra.mxu0 0.0
    %127 = vmatprep.subr.mxu0 0.0
    %128 = vmatpush2.msra.mxu0 0.0
    %129 = vmatprep.subr.mxu0 0.0
    %130 = vmatpush2.msra.mxu0 0.0
    %131 = vmatprep.mubr.f32.mxu0 0.0
    %132 = vmatmul.mubr.f32.gmra.mxu0 %v56
    %v133 = vpop.f32.mrf.mxu0
    %v134 = vadd.f32 %v53, %v133
    %v135 = vpop.f32.mrf.mxu0
    %136 = vmatprep.mubr.f32.mxu0 0.0
    %137 = vmatmul.mubr.f32.gmra.mxu0 %v59
    %v138 = vpop.f32.mrf.mxu0
    %v139 = vadd.f32 %v53, %v138
    %v140 = vpop.f32.mrf.mxu0
    %141 = vmatprep.mubr.f32.mxu0 0.0
    %142 = vmatmul.mubr.f32.gmra.mxu0 %v62
    %v143 = vpop.f32.mrf.mxu0
    %v144 = vadd.f32 %v53, %v143
    %v145 = vpop.f32.mrf.mxu0
    %146 = vmatprep.mubr.f32.mxu0 0.0
    %147 = vmatmul.mubr.f32.gmra.mxu0 %v65
    %v148 = vpop.f32.mrf.mxu0
    %v149 = vadd.f32 %v53, %v148
    %v150 = vpop.f32.mrf.mxu0
    %151 = vdwg.mxu0
    %v152 = vld [vmem:[%s1] sm:$0xff]
    %v153 = vld [vmem:[%s1 + $0x8] sm:$0xff]
    %v154 = vld [vmem:[%s2] sm:$0xff]
    %v155 = vld [vmem:[%s4] sm:$0xff]
    %v156 = vld [vmem:[%s4 + $0x8] sm:$0xff]
    %v157 = vld [vmem:[%s4 + $0x10] sm:$0xff]
    %v158 = vld [vmem:[%s4 + $0x18] sm:$0xff]
    %v159 = vlaneseq
    %v160 = vshrl.u32 %v159, 7
    %v161 = vsub.s32 1, %v160
    %v162 = vrot.slane %v36, %v161
    %vm163 = vcmask 261120
    %v165 = vsel %vm163, %v152, 0
    %v168 = vsel %vm163, %v153, 0
    %170 = vmatprep.subr.mxu0 0.0
    %171 = vmatpush1.msra.mxu0 0.0
    %172 = vmatprep.subr.mxu0 0.0
    %173 = vmatpush1.msra.mxu0 0.0
    %174 = vmatprep.subr.mxu0 0.0
    %175 = vmatpush1.msra.mxu0 0.0
    %176 = vmatprep.subr.mxu0 0.0
    %177 = vmatpush1.msra.mxu0 0.0
    %178 = vmatprep.subr.mxu0 0.0
    %179 = vmatpush1.msra.mxu0 0.0
    %180 = vmatprep.subr.mxu0 0.0
    %181 = vmatpush1.msra.mxu0 0.0
    %182 = vmatprep.subr.mxu0 0.0
    %183 = vmatpush1.msra.mxu0 0.0
    %184 = vmatprep.subr.mxu0 0.0
    %185 = vmatpush1.msra.mxu0 0.0
    %186 = vmatprep.subr.mxu0 0.0
    %187 = vmatpush1.msra.mxu0 0.0
    %188 = vmatprep.subr.mxu0 0.0
    %189 = vmatpush1.msra.mxu0 0.0
    %190 = vmatprep.subr.mxu0 0.0
    %191 = vmatpush1.msra.mxu0 0.0
    %192 = vmatprep.subr.mxu0 0.0
    %193 = vmatpush1.msra.mxu0 0.0
    %194 = vmatprep.subr.mxu0 0.0
    %195 = vmatpush1.msra.mxu0 %v158
    %196 = vmatprep.subr.mxu0 0.0
    %197 = vmatpush1.msra.mxu0 %v157
    %198 = vmatprep.subr.mxu0 0.0
    %199 = vmatpush1.msra.mxu0 %v156
    %200 = vmatprep.subr.mxu0 0.0
    %201 = vmatpush1.msra.mxu0 %v155
    %202 = vmatprep.subr.mxu0 0.0
    %203 = vmatpush2.msra.mxu0 0.0
    %204 = vmatprep.subr.mxu0 0.0
    %205 = vmatpush2.msra.mxu0 0.0
    %206 = vmatprep.subr.mxu0 0.0
    %207 = vmatpush2.msra.mxu0 0.0
    %208 = vmatprep.subr.mxu0 0.0
    %209 = vmatpush2.msra.mxu0 0.0
    %210 = vmatprep.subr.mxu0 0.0
    %211 = vmatpush2.msra.mxu0 0.0
    %212 = vmatprep.subr.mxu0 0.0
    %213 = vmatpush2.msra.mxu0 0.0
    %214 = vmatprep.subr.mxu0 0.0
    %215 = vmatpush2.msra.mxu0 0.0
    %216 = vmatprep.subr.mxu0 0.0
    %217 = vmatpush2.msra.mxu0 0.0
    %218 = vmatprep.subr.mxu0 0.0
    %219 = vmatpush2.msra.mxu0 0.0
    %220 = vmatprep.subr.mxu0 0.0
    %221 = vmatpush2.msra.mxu0 0.0
    %222 = vmatprep.subr.mxu0 0.0
    %223 = vmatpush2.msra.mxu0 0.0
    %224 = vmatprep.subr.mxu0 0.0
    %225 = vmatpush2.msra.mxu0 0.0
    %226 = vmatprep.subr.mxu0 0.0
    %227 = vmatpush2.msra.mxu0 0.0
    %228 = vmatprep.subr.mxu0 0.0
    %229 = vmatpush2.msra.mxu0 0.0
    %230 = vmatprep.subr.mxu0 0.0
    %231 = vmatpush2.msra.mxu0 0.0
    %232 = vmatprep.subr.mxu0 0.0
    %233 = vmatpush2.msra.mxu0 0.0
    %234 = vmatprep.mubr.f32.mxu0 0.0
    %235 = vmatmul.mubr.f32.gmra.mxu0 %v165
    %v236 = vpop.f32.mrf.mxu0
    %v237 = vadd.f32 %v162, %v236
    %v238 = vpop.f32.mrf.mxu0
    %239 = vmatprep.mubr.f32.mxu0 0.0
    %240 = vmatmul.mubr.f32.gmra.mxu0 %v168
    %v241 = vpop.f32.mrf.mxu0
    %v242 = vadd.f32 %v162, %v241
    %v243 = vpop.f32.mrf.mxu0
    %244 = vdwg.mxu0
    %246 = vrot.lane.b32.xlu0 %v237, 96
    %v247 = vpop.permute.xlu0 %246
    %v248 = vsel %vm163, %v237, 0
    %v250 = vsel %vm163, %v247, 0
    %252 = vmatprep.subr.mxu0 0.0
    %253 = vmatpush1.xpose.msra.mxu0 0.0
    %254 = vmatprep.subr.mxu0 0.0
    %255 = vmatpush1.xpose.msra.mxu0 0.0
    %256 = vmatprep.subr.mxu0 0.0
    %257 = vmatpush1.xpose.msra.mxu0 0.0
    %258 = vmatprep.subr.mxu0 0.0
    %259 = vmatpush1.xpose.msra.mxu0 0.0
    %260 = vmatprep.subr.mxu0 0.0
    %261 = vmatpush1.xpose.msra.mxu0 0.0
    %262 = vmatprep.subr.mxu0 0.0
    %263 = vmatpush1.xpose.msra.mxu0 0.0
    %264 = vmatprep.subr.mxu0 0.0
    %265 = vmatpush1.xpose.msra.mxu0 0.0
    %266 = vmatprep.subr.mxu0 0.0
    %267 = vmatpush1.xpose.msra.mxu0 0.0
    %268 = vmatprep.subr.mxu0 0.0
    %269 = vmatpush1.xpose.msra.mxu0 0.0
    %270 = vmatprep.subr.mxu0 0.0
    %271 = vmatpush1.xpose.msra.mxu0 0.0
    %272 = vmatprep.subr.mxu0 0.0
    %273 = vmatpush1.xpose.msra.mxu0 0.0
    %274 = vmatprep.subr.mxu0 0.0
    %275 = vmatpush1.xpose.msra.mxu0 0.0
    %276 = vmatprep.subr.mxu0 0.0
    %277 = vmatpush1.xpose.msra.mxu0 0.0
    %278 = vmatprep.subr.mxu0 0.0
    %279 = vmatpush1.xpose.msra.mxu0 0.0
    %280 = vmatprep.subr.mxu0 0.0
    %281 = vmatpush1.xpose.msra.mxu0 0.0
    %282 = vmatprep.subr.mxu0 0.0
    %283 = vmatpush1.xpose.msra.mxu0 %v250
    %284 = vmatprep.subr.mxu0 0.0
    %285 = vmatpush2.xpose.msra.mxu0 0.0
    %286 = vmatprep.subr.mxu0 0.0
    %287 = vmatpush2.xpose.msra.mxu0 0.0
    %288 = vmatprep.subr.mxu0 0.0
    %289 = vmatpush2.xpose.msra.mxu0 0.0
    %290 = vmatprep.subr.mxu0 0.0
    %291 = vmatpush2.xpose.msra.mxu0 0.0
    %292 = vmatprep.subr.mxu0 0.0
    %293 = vmatpush2.xpose.msra.mxu0 0.0
    %294 = vmatprep.subr.mxu0 0.0
    %295 = vmatpush2.xpose.msra.mxu0 0.0
    %296 = vmatprep.subr.mxu0 0.0
    %297 = vmatpush2.xpose.msra.mxu0 0.0
    %298 = vmatprep.subr.mxu0 0.0
    %299 = vmatpush2.xpose.msra.mxu0 0.0
    %300 = vmatprep.subr.mxu0 0.0
    %301 = vmatpush2.xpose.msra.mxu0 0.0
    %302 = vmatprep.subr.mxu0 0.0
    %303 = vmatpush2.xpose.msra.mxu0 0.0
    %304 = vmatprep.subr.mxu0 0.0
    %305 = vmatpush2.xpose.msra.mxu0 0.0
    %306 = vmatprep.subr.mxu0 0.0
    %307 = vmatpush2.xpose.msra.mxu0 0.0
    %308 = vmatprep.subr.mxu0 0.0
    %309 = vmatpush2.xpose.msra.mxu0 0.0
    %310 = vmatprep.subr.mxu0 0.0
    %311 = vmatpush2.xpose.msra.mxu0 0.0
    %312 = vmatprep.subr.mxu0 0.0
    %313 = vmatpush2.xpose.msra.mxu0 0.0
    %314 = vmatprep.subr.mxu0 0.0
    %315 = vmatpush2.xpose.msra.mxu0 0.0
    %316 = vmatprep.mubr.f32.mxu0 0.0
    %317 = vmatmul.mubr.f32.gmra.mxu0 %v248
    %v318 = vpop.f32.mrf.mxu0
    %v319 = vadd.f32 0.0, %v318
    %v320 = vpop.f32.mrf.mxu0
    %321 = vdwg.mxu0
    %v322 = vmul.f32 %v319, 0.17677669
    %v323 = vadd.f32 %v322, %v154
    %vm324 = vcmask 64512
    %v325 = vsel %vm324, %v323, -inf
    %326 = vmax.xlane.f32.xlu0 %v325
    %v327 = vpop.xlane.xlu0 %326
    %v328 = vsub.f32 %v323, %v327
    %v329 = vmul.f32 %v328, 1.442695
    %v330 = vpow.pop %v329
    %v331 = vsel %vm324, %v330, 0.0
    %332 = vadd.xlane.f32.xlu0 %v331
    %v333 = vpop.xlane.xlu0 %332
    %v334 = vrcp.pop %v333
    %v335 = vmul.f32 %v330, %v334
    %336 = vrot.lane.b32.xlu0 %v237, 64
    %v337 = vpop.permute.xlu0 %336
    %v340 = vsel %vm324, %v335, 0
    %342 = vmatprep.subr.mxu0 0.0
    %343 = vmatpush1.msra.mxu0 0.0
    %344 = vmatprep.subr.mxu0 0.0
    %345 = vmatpush1.msra.mxu0 0.0
    %346 = vmatprep.subr.mxu0 0.0
    %347 = vmatpush1.msra.mxu0 0.0
    %348 = vmatprep.subr.mxu0 0.0
    %349 = vmatpush1.msra.mxu0 0.0
    %350 = vmatprep.subr.mxu0 0.0
    %351 = vmatpush1.msra.mxu0 0.0
    %352 = vmatprep.subr.mxu0 0.0
    %353 = vmatpush1.msra.mxu0 0.0
    %354 = vmatprep.subr.mxu0 0.0
    %355 = vmatpush1.msra.mxu0 0.0
    %356 = vmatprep.subr.mxu0 0.0
    %357 = vmatpush1.msra.mxu0 0.0
    %358 = vmatprep.subr.mxu0 0.0
    %359 = vmatpush1.msra.mxu0 0.0
    %360 = vmatprep.subr.mxu0 0.0
    %361 = vmatpush1.msra.mxu0 0.0
    %362 = vmatprep.subr.mxu0 0.0
    %363 = vmatpush1.msra.mxu0 0.0
    %364 = vmatprep.subr.mxu0 0.0
    %365 = vmatpush1.msra.mxu0 0.0
    %366 = vmatprep.subr.mxu0 0.0
    %367 = vmatpush1.msra.mxu0 0.0
    %368 = vmatprep.subr.mxu0 0.0
    %369 = vmatpush1.msra.mxu0 0.0
    %370 = vmatprep.subr.mxu0 0.0
    %371 = vmatpush1.msra.mxu0 0.0
    %372 = vmatprep.subr.mxu0 0.0
    %373 = vmatpush1.msra.mxu0 %v337
    %374 = vmatprep.subr.mxu0 0.0
    %375 = vmatpush2.msra.mxu0 0.0
    %376 = vmatprep.subr.mxu0 0.0
    %377 = vmatpush2.msra.mxu0 0.0
    %378 = vmatprep.subr.mxu0 0.0
    %379 = vmatpush2.msra.mxu0 0.0
    %380 = vmatprep.subr.mxu0 0.0
    %381 = vmatpush2.msra.mxu0 0.0
    %382 = vmatprep.subr.mxu0 0.0
    %383 = vmatpush2.msra.mxu0 0.0
    %384 = vmatprep.subr.mxu0 0.0
    %385 = vmatpush2.msra.mxu0 0.0
    %386 = vmatprep.subr.mxu0 0.0
    %387 = vmatpush2.msra.mxu0 0.0
    %388 = vmatprep.subr.mxu0 0.0
    %389 = vmatpush2.msra.mxu0 0.0
    %390 = vmatprep.subr.mxu0 0.0
    %391 = vmatpush2.msra.mxu0 0.0
    %392 = vmatprep.subr.mxu0 0.0
    %393 = vmatpush2.msra.mxu0 0.0
    %394 = vmatprep.subr.mxu0 0.0
    %395 = vmatpush2.msra.mxu0 0.0
    %396 = vmatprep.subr.mxu0 0.0
    %397 = vmatpush2.msra.mxu0 0.0
    %398 = vmatprep.subr.mxu0 0.0
    %399 = vmatpush2.msra.mxu0 0.0
    %400 = vmatprep.subr.mxu0 0.0
    %401 = vmatpush2.msra.mxu0 0.0
    %402 = vmatprep.subr.mxu0 0.0
    %403 = vmatpush2.msra.mxu0 0.0
    %404 = vmatprep.subr.mxu0 0.0
    %405 = vmatpush2.msra.mxu0 0.0
    %406 = vmatprep.mubr.f32.mxu0 0.0
    %407 = vmatmul.mubr.f32.gmra.mxu0 %v340
    %v408 = vpop.f32.mrf.mxu0
    %v409 = vadd.f32 0.0, %v408
    %v410 = vpop.f32.mrf.mxu0
    %411 = vdwg.mxu0
    %413 = vrot.lane.b32.xlu0 %v242, 96
    %v414 = vpop.permute.xlu0 %413
    %v415 = vsel %vm163, %v242, 0
    %v417 = vsel %vm163, %v414, 0
    %419 = vmatprep.subr.mxu0 0.0
    %420 = vmatpush1.xpose.msra.mxu0 0.0
    %421 = vmatprep.subr.mxu0 0.0
    %422 = vmatpush1.xpose.msra.mxu0 0.0
    %423 = vmatprep.subr.mxu0 0.0
    %424 = vmatpush1.xpose.msra.mxu0 0.0
    %425 = vmatprep.subr.mxu0 0.0
    %426 = vmatpush1.xpose.msra.mxu0 0.0
    %427 = vmatprep.subr.mxu0 0.0
    %428 = vmatpush1.xpose.msra.mxu0 0.0
    %429 = vmatprep.subr.mxu0 0.0
    %430 = vmatpush1.xpose.msra.mxu0 0.0
    %431 = vmatprep.subr.mxu0 0.0
    %432 = vmatpush1.xpose.msra.mxu0 0.0
    %433 = vmatprep.subr.mxu0 0.0
    %434 = vmatpush1.xpose.msra.mxu0 0.0
    %435 = vmatprep.subr.mxu0 0.0
    %436 = vmatpush1.xpose.msra.mxu0 0.0
    %437 = vmatprep.subr.mxu0 0.0
    %438 = vmatpush1.xpose.msra.mxu0 0.0
    %439 = vmatprep.subr.mxu0 0.0
    %440 = vmatpush1.xpose.msra.mxu0 0.0
    %441 = vmatprep.subr.mxu0 0.0
    %442 = vmatpush1.xpose.msra.mxu0 0.0
    %443 = vmatprep.subr.mxu0 0.0
    %444 = vmatpush1.xpose.msra.mxu0 0.0
    %445 = vmatprep.subr.mxu0 0.0
    %446 = vmatpush1.xpose.msra.mxu0 0.0
    %447 = vmatprep.subr.mxu0 0.0
    %448 = vmatpush1.xpose.msra.mxu0 0.0
    %449 = vmatprep.subr.mxu0 0.0
    %450 = vmatpush1.xpose.msra.mxu0 %v417
    %451 = vmatprep.subr.mxu0 0.0
    %452 = vmatpush2.xpose.msra.mxu0 0.0
    %453 = vmatprep.subr.mxu0 0.0
    %454 = vmatpush2.xpose.msra.mxu0 0.0
    %455 = vmatprep.subr.mxu0 0.0
    %456 = vmatpush2.xpose.msra.mxu0 0.0
    %457 = vmatprep.subr.mxu0 0.0
    %458 = vmatpush2.xpose.msra.mxu0 0.0
    %459 = vmatprep.subr.mxu0 0.0
    %460 = vmatpush2.xpose.msra.mxu0 0.0
    %461 = vmatprep.subr.mxu0 0.0
    %462 = vmatpush2.xpose.msra.mxu0 0.0
    %463 = vmatprep.subr.mxu0 0.0
    %464 = vmatpush2.xpose.msra.mxu0 0.0
    %465 = vmatprep.subr.mxu0 0.0
    %466 = vmatpush2.xpose.msra.mxu0 0.0
    %467 = vmatprep.subr.mxu0 0.0
    %468 = vmatpush2.xpose.msra.mxu0 0.0
    %469 = vmatprep.subr.mxu0 0.0
    %470 = vmatpush2.xpose.msra.mxu0 0.0
    %471 = vmatprep.subr.mxu0 0.0
    %472 = vmatpush2.xpose.msra.mxu0 0.0
    %473 = vmatprep.subr.mxu0 0.0
    %474 = vmatpush2.xpose.msra.mxu0 0.0
    %475 = vmatprep.subr.mxu0 0.0
    %476 = vmatpush2.xpose.msra.mxu0 0.0
    %477 = vmatprep.subr.mxu0 0.0
    %478 = vmatpush2.xpose.msra.mxu0 0.0
    %479 = vmatprep.subr.mxu0 0.0
    %480 = vmatpush2.xpose.msra.mxu0 0.0
    %481 = vmatprep.subr.mxu0 0.0
    %482 = vmatpush2.xpose.msra.mxu0 0.0
    %483 = vmatprep.mubr.f32.mxu0 0.0
    %484 = vmatmul.mubr.f32.gmra.mxu0 %v415
    %v485 = vpop.f32.mrf.mxu0
    %v486 = vadd.f32 0.0, %v485
    %v487 = vpop.f32.mrf.mxu0
    %488 = vdwg.mxu0
    %v489 = vmul.f32 %v486, 0.17677669
    %v490 = vadd.f32 %v489, %v154
    %v491 = vsel %vm324, %v490, -inf
    %492 = vmax.xlane.f32.xlu0 %v491
    %v493 = vpop.xlane.xlu0 %492
    %v494 = vsub.f32 %v490, %v493
    %v495 = vmul.f32 %v494, 1.442695
    %v496 = vpow.pop %v495
    %v497 = vsel %vm324, %v496, 0.0
    %498 = vadd.xlane.f32.xlu0 %v497
    %v499 = vpop.xlane.xlu0 %498
    %v500 = vrcp.pop %v499
    %v501 = vmul.f32 %v496, %v500
    %502 = vrot.lane.b32.xlu0 %v242, 64
    %v503 = vpop.permute.xlu0 %502
    %v506 = vsel %vm324, %v501, 0
    %508 = vmatprep.subr.mxu0 0.0
    %509 = vmatpush1.msra.mxu0 0.0
    %510 = vmatprep.subr.mxu0 0.0
    %511 = vmatpush1.msra.mxu0 0.0
    %512 = vmatprep.subr.mxu0 0.0
    %513 = vmatpush1.msra.mxu0 0.0
    %514 = vmatprep.subr.mxu0 0.0
    %515 = vmatpush1.msra.mxu0 0.0
    %516 = vmatprep.subr.mxu0 0.0
    %517 = vmatpush1.msra.mxu0 0.0
    %518 = vmatprep.subr.mxu0 0.0
    %519 = vmatpush1.msra.mxu0 0.0
    %520 = vmatprep.subr.mxu0 0.0
    %521 = vmatpush1.msra.mxu0 0.0
    %522 = vmatprep.subr.mxu0 0.0
    %523 = vmatpush1.msra.mxu0 0.0
    %524 = vmatprep.subr.mxu0 0.0
    %525 = vmatpush1.msra.mxu0 0.0
    %526 = vmatprep.subr.mxu0 0.0
    %527 = vmatpush1.msra.mxu0 0.0
    %528 = vmatprep.subr.mxu0 0.0
    %529 = vmatpush1.msra.mxu0 0.0
    %530 = vmatprep.subr.mxu0 0.0
    %531 = vmatpush1.msra.mxu0 0.0
    %532 = vmatprep.subr.mxu0 0.0
    %533 = vmatpush1.msra.mxu0 0.0
    %534 = vmatprep.subr.mxu0 0.0
    %535 = vmatpush1.msra.mxu0 0.0
    %536 = vmatprep.subr.mxu0 0.0
    %537 = vmatpush1.msra.mxu0 0.0
    %538 = vmatprep.subr.mxu0 0.0
    %539 = vmatpush1.msra.mxu0 %v503
    %540 = vmatprep.subr.mxu0 0.0
    %541 = vmatpush2.msra.mxu0 0.0
    %542 = vmatprep.subr.mxu0 0.0
    %543 = vmatpush2.msra.mxu0 0.0
    %544 = vmatprep.subr.mxu0 0.0
    %545 = vmatpush2.msra.mxu0 0.0
    %546 = vmatprep.subr.mxu0 0.0
    %547 = vmatpush2.msra.mxu0 0.0
    %548 = vmatprep.subr.mxu0 0.0
    %549 = vmatpush2.msra.mxu0 0.0
    %550 = vmatprep.subr.mxu0 0.0
    %551 = vmatpush2.msra.mxu0 0.0
    %552 = vmatprep.subr.mxu0 0.0
    %553 = vmatpush2.msra.mxu0 0.0
    %554 = vmatprep.subr.mxu0 0.0
    %555 = vmatpush2.msra.mxu0 0.0
    %556 = vmatprep.subr.mxu0 0.0
    %557 = vmatpush2.msra.mxu0 0.0
    %558 = vmatprep.subr.mxu0 0.0
    %559 = vmatpush2.msra.mxu0 0.0
    %560 = vmatprep.subr.mxu0 0.0
    %561 = vmatpush2.msra.mxu0 0.0
    %562 = vmatprep.subr.mxu0 0.0
    %563 = vmatpush2.msra.mxu0 0.0
    %564 = vmatprep.subr.mxu0 0.0
    %565 = vmatpush2.msra.mxu0 0.0
    %566 = vmatprep.subr.mxu0 0.0
    %567 = vmatpush2.msra.mxu0 0.0
    %568 = vmatprep.subr.mxu0 0.0
    %569 = vmatpush2.msra.mxu0 0.0
    %570 = vmatprep.subr.mxu0 0.0
    %571 = vmatpush2.msra.mxu0 0.0
    %572 = vmatprep.mubr.f32.mxu0 0.0
    %573 = vmatmul.mubr.f32.gmra.mxu0 %v506
    %v574 = vpop.f32.mrf.mxu0
    %v575 = vadd.f32 0.0, %v574
    %v576 = vpop.f32.mrf.mxu0
    %577 = vdwg.mxu0
    %v579 = vsel %vm163, %v409, 0
    %v582 = vsel %vm163, %v575, 0
    %584 = vmatprep.subr.mxu0 0.0
    %585 = vmatpush1.msra.mxu0 0.0
    %586 = vmatprep.subr.mxu0 0.0
    %587 = vmatpush1.msra.mxu0 0.0
    %588 = vmatprep.subr.mxu0 0.0
    %589 = vmatpush1.msra.mxu0 0.0
    %590 = vmatprep.subr.mxu0 0.0
    %591 = vmatpush1.msra.mxu0 0.0
    %592 = vmatprep.subr.mxu0 0.0
    %593 = vmatpush1.msra.mxu0 0.0
    %594 = vmatprep.subr.mxu0 0.0
    %595 = vmatpush1.msra.mxu0 0.0
    %596 = vmatprep.subr.mxu0 0.0
    %597 = vmatpush1.msra.mxu0 0.0
    %598 = vmatprep.subr.mxu0 0.0
    %599 = vmatpush1.msra.mxu0 0.0
    %600 = vmatprep.subr.mxu0 0.0
    %601 = vmatpush1.msra.mxu0 0.0
    %602 = vmatprep.subr.mxu0 0.0
    %603 = vmatpush1.msra.mxu0 0.0
    %604 = vmatprep.subr.mxu0 0.0
    %605 = vmatpush1.msra.mxu0 0.0
    %606 = vmatprep.subr.mxu0 0.0
    %607 = vmatpush1.msra.mxu0 0.0
    %608 = vmatprep.subr.mxu0 0.0
    %609 = vmatpush1.msra.mxu0 %v158
    %610 = vmatprep.subr.mxu0 0.0
    %611 = vmatpush1.msra.mxu0 %v157
    %612 = vmatprep.subr.mxu0 0.0
    %613 = vmatpush1.msra.mxu0 %v156
    %614 = vmatprep.subr.mxu0 0.0
    %615 = vmatpush1.msra.mxu0 %v155
    %616 = vmatprep.subr.mxu0 0.0
    %617 = vmatpush2.msra.mxu0 0.0
    %618 = vmatprep.subr.mxu0 0.0
    %619 = vmatpush2.msra.mxu0 0.0
    %620 = vmatprep.subr.mxu0 0.0
    %621 = vmatpush2.msra.mxu0 0.0
    %622 = vmatprep.subr.mxu0 0.0
    %623 = vmatpush2.msra.mxu0 0.0
    %624 = vmatprep.subr.mxu0 0.0
    %625 = vmatpush2.msra.mxu0 0.0
    %626 = vmatprep.subr.mxu0 0.0
    %627 = vmatpush2.msra.mxu0 0.0
    %628 = vmatprep.subr.mxu0 0.0
    %629 = vmatpush2.msra.mxu0 0.0
    %630 = vmatprep.subr.mxu0 0.0
    %631 = vmatpush2.msra.mxu0 0.0
    %632 = vmatprep.subr.mxu0 0.0
    %633 = vmatpush2.msra.mxu0 0.0
    %634 = vmatprep.subr.mxu0 0.0
    %635 = vmatpush2.msra.mxu0 0.0
    %636 = vmatprep.subr.mxu0 0.0
    %637 = vmatpush2.msra.mxu0 0.0
    %638 = vmatprep.subr.mxu0 0.0
    %639 = vmatpush2.msra.mxu0 0.0
    %640 = vmatprep.subr.mxu0 0.0
    %641 = vmatpush2.msra.mxu0 0.0
    %642 = vmatprep.subr.mxu0 0.0
    %643 = vmatpush2.msra.mxu0 0.0
    %644 = vmatprep.subr.mxu0 0.0
    %645 = vmatpush2.msra.mxu0 0.0
    %646 = vmatprep.subr.mxu0 0.0
    %647 = vmatpush2.msra.mxu0 0.0
    %648 = vmatprep.mubr.f32.mxu0 0.0
    %649 = vmatmul.mubr.f32.gmra.mxu0 %v579
    %v650 = vpop.f32.mrf.mxu0
    %v651 = vadd.f32 0.0, %v650
    %v652 = vpop.f32.mrf.mxu0
    %653 = vmatprep.mubr.f32.mxu0 0.0
    %654 = vmatmul.mubr.f32.gmra.mxu0 %v582
    %v655 = vpop.f32.mrf.mxu0
    %v656 = vadd.f32 0.0, %v655
    %v657 = vpop.f32.mrf.mxu0
    %658 = vdwg.mxu0
    %v659 = vlaneseq
    %v660 = vshrl.u32 %v659, 7
    %v661 = vsub.s32 2, %v660
    %v662 = vrot.slane %v36, %v661
    %664 = vrot.lane.b32.xlu0 %v662, 96
    %v665 = vpop.permute.xlu0 %664
    %v667 = vadd.f32 %v651, %v665
    %v668 = vadd.f32 %v656, %v665
    %671 = vrot.lane.b32.xlu0 %v667, 32
    %v672 = vpop.permute.xlu0 %671
    %673 = vrot.lane.b32.xlu0 %v668, 32
    %v674 = vpop.permute.xlu0 %673
    %v677 = vadd.f32 %v152, %v672
    %v678 = vadd.f32 %v153, %v674
    %v679 = vsel %vm163, %v677, 0.0
    %680 = vadd.xlane.f32.xlu0 %v679
    %v681 = vpop.xlane.xlu0 %680
    %v682 = vsel %vm163, %v678, 0.0
    %683 = vadd.xlane.f32.xlu0 %v682
    %v684 = vpop.xlane.xlu0 %683
    %v685 = vrcp.pop 32.0
    %v686 = vmul.f32 %v681, %v685
    %v687 = vmul.f32 %v684, %v685
    %v688 = vsub.f32 %v677, %v686
    %v689 = vsub.f32 %v678, %v687
    %v690 = vmul.f32 %v688, %v688
    %v691 = vmul.f32 %v689, %v689
    %v692 = vsel %vm163, %v690, 0.0
    %693 = vadd.xlane.f32.xlu0 %v692
    %v694 = vpop.xlane.xlu0 %693
    %v695 = vsel %vm163, %v691, 0.0
    %696 = vadd.xlane.f32.xlu0 %v695
    %v697 = vpop.xlane.xlu0 %696
    %v698 = vmul.f32 %v694, %v685
    %v699 = vmul.f32 %v697, %v685
    %v700 = vadd.f32 %v698, 1e-05
    %v701 = vadd.f32 %v699, 1e-05
    %v702 = vrsqrt.pop %v700
    %v703 = vrsqrt.pop %v701
    %v704 = vmul.f32 %v688, %v702
    %v705 = vmul.f32 %v689, %v703
    %v706 = vlaneseq
    %v707 = vshrl.u32 %v706, 7
    %v708 = vsub.s32 0, %v707
    %v709 = vrot.slane %v37, %v708
    %v710 = vmul.f32 %v704, %v709
    %v711 = vmul.f32 %v705, %v709
    %v712 = vlaneseq
    %v713 = vshrl.u32 %v712, 7
    %v714 = vsub.s32 1, %v713
    %v715 = vrot.slane %v37, %v714
    %v716 = vadd.f32 %v710, %v715
    %v717 = vadd.f32 %v711, %v715
    %v718 = vld [vmem:[%s5] sm:$0xff]
    %v719 = vld [vmem:[%s5 + $0x8] sm:$0xff]
    %v720 = vld [vmem:[%s5 + $0x10] sm:$0xff]
    %v721 = vld [vmem:[%s5 + $0x18] sm:$0xff]
    %v723 = vsel %vm163, %v716, 0
    %v726 = vsel %vm163, %v717, 0
    %728 = vmatprep.subr.mxu0 0.0
    %729 = vmatpush1.msra.mxu0 0.0
    %730 = vmatprep.subr.mxu0 0.0
    %731 = vmatpush1.msra.mxu0 0.0
    %732 = vmatprep.subr.mxu0 0.0
    %733 = vmatpush1.msra.mxu0 0.0
    %734 = vmatprep.subr.mxu0 0.0
    %735 = vmatpush1.msra.mxu0 0.0
    %736 = vmatprep.subr.mxu0 0.0
    %737 = vmatpush1.msra.mxu0 0.0
    %738 = vmatprep.subr.mxu0 0.0
    %739 = vmatpush1.msra.mxu0 0.0
    %740 = vmatprep.subr.mxu0 0.0
    %741 = vmatpush1.msra.mxu0 0.0
    %742 = vmatprep.subr.mxu0 0.0
    %743 = vmatpush1.msra.mxu0 0.0
    %744 = vmatprep.subr.mxu0 0.0
    %745 = vmatpush1.msra.mxu0 0.0
    %746 = vmatprep.subr.mxu0 0.0
    %747 = vmatpush1.msra.mxu0 0.0
    %748 = vmatprep.subr.mxu0 0.0
    %749 = vmatpush1.msra.mxu0 0.0
    %750 = vmatprep.subr.mxu0 0.0
    %751 = vmatpush1.msra.mxu0 0.0
    %752 = vmatprep.subr.mxu0 0.0
    %753 = vmatpush1.msra.mxu0 %v721
    %754 = vmatprep.subr.mxu0 0.0
    %755 = vmatpush1.msra.mxu0 %v720
    %756 = vmatprep.subr.mxu0 0.0
    %757 = vmatpush1.msra.mxu0 %v719
    %758 = vmatprep.subr.mxu0 0.0
    %759 = vmatpush1.msra.mxu0 %v718
    %760 = vmatprep.subr.mxu0 0.0
    %761 = vmatpush2.msra.mxu0 0.0
    %762 = vmatprep.subr.mxu0 0.0
    %763 = vmatpush2.msra.mxu0 0.0
    %764 = vmatprep.subr.mxu0 0.0
    %765 = vmatpush2.msra.mxu0 0.0
    %766 = vmatprep.subr.mxu0 0.0
    %767 = vmatpush2.msra.mxu0 0.0
    %768 = vmatprep.subr.mxu0 0.0
    %769 = vmatpush2.msra.mxu0 0.0
    %770 = vmatprep.subr.mxu0 0.0
    %771 = vmatpush2.msra.mxu0 0.0
    %772 = vmatprep.subr.mxu0 0.0
    %773 = vmatpush2.msra.mxu0 0.0
    %774 = vmatprep.subr.mxu0 0.0
    %775 = vmatpush2.msra.mxu0 0.0
    %776 = vmatprep.subr.mxu0 0.0
    %777 = vmatpush2.msra.mxu0 0.0
    %778 = vmatprep.subr.mxu0 0.0
    %779 = vmatpush2.msra.mxu0 0.0
    %780 = vmatprep.subr.mxu0 0.0
    %781 = vmatpush2.msra.mxu0 0.0
    %782 = vmatprep.subr.mxu0 0.0
    %783 = vmatpush2.msra.mxu0 0.0
    %784 = vmatprep.subr.mxu0 0.0
    %785 = vmatpush2.msra.mxu0 0.0
    %786 = vmatprep.subr.mxu0 0.0
    %787 = vmatpush2.msra.mxu0 0.0
    %788 = vmatprep.subr.mxu0 0.0
    %789 = vmatpush2.msra.mxu0 0.0
    %790 = vmatprep.subr.mxu0 0.0
    %791 = vmatpush2.msra.mxu0 0.0
    %792 = vmatprep.mubr.f32.mxu0 0.0
    %793 = vmatmul.mubr.f32.gmra.mxu0 %v723
    %v794 = vpop.f32.mrf.mxu0
    %v795 = vadd.f32 0.0, %v794
    %v796 = vpop.f32.mrf.mxu0
    %797 = vmatprep.mubr.f32.mxu0 0.0
    %798 = vmatmul.mubr.f32.gmra.mxu0 %v726
    %v799 = vpop.f32.mrf.mxu0
    %v800 = vadd.f32 0.0, %v799
    %v801 = vpop.f32.mrf.mxu0
    %802 = vdwg.mxu0
    %v803 = vlaneseq
    %v804 = vshrl.u32 %v803, 7
    %v805 = vsub.s32 3, %v804
    %v806 = vrot.slane %v36, %v805
    %v807 = vadd.f32 %v795, %v806
    %v808 = vadd.f32 %v800, %v806
    %v809 = vlaneseq
    %v810 = vshrl.u32 %v809, 7
    %v811 = vsub.s32 4, %v810
    %v812 = vrot.slane %v36, %v811
    %v814 = vsel %vm163, %v134, 0
    %v817 = vsel %vm163, %v139, 0
    %v820 = vsel %vm163, %v144, 0
    %v823 = vsel %vm163, %v149, 0
    %825 = vmatprep.subr.mxu0 0.0
    %826 = vmatpush1.msra.mxu0 0.0
    %827 = vmatprep.subr.mxu0 0.0
    %828 = vmatpush1.msra.mxu0 0.0
    %829 = vmatprep.subr.mxu0 0.0
    %830 = vmatpush1.msra.mxu0 0.0
    %831 = vmatprep.subr.mxu0 0.0
    %832 = vmatpush1.msra.mxu0 0.0
    %833 = vmatprep.subr.mxu0 0.0
    %834 = vmatpush1.msra.mxu0 0.0
    %835 = vmatprep.subr.mxu0 0.0
    %836 = vmatpush1.msra.mxu0 0.0
    %837 = vmatprep.subr.mxu0 0.0
    %838 = vmatpush1.msra.mxu0 0.0
    %839 = vmatprep.subr.mxu0 0.0
    %840 = vmatpush1.msra.mxu0 0.0
    %841 = vmatprep.subr.mxu0 0.0
    %842 = vmatpush1.msra.mxu0 0.0
    %843 = vmatprep.subr.mxu0 0.0
    %844 = vmatpush1.msra.mxu0 0.0
    %845 = vmatprep.subr.mxu0 0.0
    %846 = vmatpush1.msra.mxu0 0.0
    %847 = vmatprep.subr.mxu0 0.0
    %848 = vmatpush1.msra.mxu0 0.0
    %849 = vmatprep.subr.mxu0 0.0
    %850 = vmatpush1.msra.mxu0 %v721
    %851 = vmatprep.subr.mxu0 0.0
    %852 = vmatpush1.msra.mxu0 %v720
    %853 = vmatprep.subr.mxu0 0.0
    %854 = vmatpush1.msra.mxu0 %v719
    %855 = vmatprep.subr.mxu0 0.0
    %856 = vmatpush1.msra.mxu0 %v718
    %857 = vmatprep.subr.mxu0 0.0
    %858 = vmatpush2.msra.mxu0 0.0
    %859 = vmatprep.subr.mxu0 0.0
    %860 = vmatpush2.msra.mxu0 0.0
    %861 = vmatprep.subr.mxu0 0.0
    %862 = vmatpush2.msra.mxu0 0.0
    %863 = vmatprep.subr.mxu0 0.0
    %864 = vmatpush2.msra.mxu0 0.0
    %865 = vmatprep.subr.mxu0 0.0
    %866 = vmatpush2.msra.mxu0 0.0
    %867 = vmatprep.subr.mxu0 0.0
    %868 = vmatpush2.msra.mxu0 0.0
    %869 = vmatprep.subr.mxu0 0.0
    %870 = vmatpush2.msra.mxu0 0.0
    %871 = vmatprep.subr.mxu0 0.0
    %872 = vmatpush2.msra.mxu0 0.0
    %873 = vmatprep.subr.mxu0 0.0
    %874 = vmatpush2.msra.mxu0 0.0
    %875 = vmatprep.subr.mxu0 0.0
    %876 = vmatpush2.msra.mxu0 0.0
    %877 = vmatprep.subr.mxu0 0.0
    %878 = vmatpush2.msra.mxu0 0.0
    %879 = vmatprep.subr.mxu0 0.0
    %880 = vmatpush2.msra.mxu0 0.0
    %881 = vmatprep.subr.mxu0 0.0
    %882 = vmatpush2.msra.mxu0 0.0
    %883 = vmatprep.subr.mxu0 0.0
    %884 = vmatpush2.msra.mxu0 0.0
    %885 = vmatprep.subr.mxu0 0.0
    %886 = vmatpush2.msra.mxu0 0.0
    %887 = vmatprep.subr.mxu0 0.0
    %888 = vmatpush2.msra.mxu0 0.0
    %889 = vmatprep.mubr.f32.mxu0 0.0
    %890 = vmatmul.mubr.f32.gmra.mxu0 %v814
    %v891 = vpop.f32.mrf.mxu0
    %v892 = vadd.f32 %v812, %v891
    %v893 = vpop.f32.mrf.mxu0
    %894 = vmatprep.mubr.f32.mxu0 0.0
    %895 = vmatmul.mubr.f32.gmra.mxu0 %v817
    %v896 = vpop.f32.mrf.mxu0
    %v897 = vadd.f32 %v812, %v896
    %v898 = vpop.f32.mrf.mxu0
    %899 = vmatprep.mubr.f32.mxu0 0.0
    %900 = vmatmul.mubr.f32.gmra.mxu0 %v820
    %v901 = vpop.f32.mrf.mxu0
    %v902 = vadd.f32 %v812, %v901
    %v903 = vpop.f32.mrf.mxu0
    %904 = vmatprep.mubr.f32.mxu0 0.0
    %905 = vmatmul.mubr.f32.gmra.mxu0 %v823
    %v906 = vpop.f32.mrf.mxu0
    %v907 = vadd.f32 %v812, %v906
    %v908 = vpop.f32.mrf.mxu0
    %909 = vdwg.mxu0
    %912 = vrot.lane.b32.xlu0 %v892, 96
    %v913 = vpop.permute.xlu0 %912
    %914 = vrot.lane.b32.xlu0 %v897, 96
    %v915 = vpop.permute.xlu0 %914
    %v917 = vsel %vm163, %v807, 0
    %v919 = vsel %vm163, %v913, 0
    %v921 = vsel %vm163, %v915, 0
    %923 = vmatprep.subr.mxu0 0.0
    %924 = vmatpush1.xpose.msra.mxu0 0.0
    %925 = vmatprep.subr.mxu0 0.0
    %926 = vmatpush1.xpose.msra.mxu0 0.0
    %927 = vmatprep.subr.mxu0 0.0
    %928 = vmatpush1.xpose.msra.mxu0 0.0
    %929 = vmatprep.subr.mxu0 0.0
    %930 = vmatpush1.xpose.msra.mxu0 0.0
    %931 = vmatprep.subr.mxu0 0.0
    %932 = vmatpush1.xpose.msra.mxu0 0.0
    %933 = vmatprep.subr.mxu0 0.0
    %934 = vmatpush1.xpose.msra.mxu0 0.0
    %935 = vmatprep.subr.mxu0 0.0
    %936 = vmatpush1.xpose.msra.mxu0 0.0
    %937 = vmatprep.subr.mxu0 0.0
    %938 = vmatpush1.xpose.msra.mxu0 0.0
    %939 = vmatprep.subr.mxu0 0.0
    %940 = vmatpush1.xpose.msra.mxu0 0.0
    %941 = vmatprep.subr.mxu0 0.0
    %942 = vmatpush1.xpose.msra.mxu0 0.0
    %943 = vmatprep.subr.mxu0 0.0
    %944 = vmatpush1.xpose.msra.mxu0 0.0
    %945 = vmatprep.subr.mxu0 0.0
    %946 = vmatpush1.xpose.msra.mxu0 0.0
    %947 = vmatprep.subr.mxu0 0.0
    %948 = vmatpush1.xpose.msra.mxu0 0.0
    %949 = vmatprep.subr.mxu0 0.0
    %950 = vmatpush1.xpose.msra.mxu0 0.0
    %951 = vmatprep.subr.mxu0 0.0
    %952 = vmatpush1.xpose.msra.mxu0 %v921
    %953 = vmatprep.subr.mxu0 0.0
    %954 = vmatpush1.xpose.msra.mxu0 %v919
    %955 = vmatprep.subr.mxu0 0.0
    %956 = vmatpush2.xpose.msra.mxu0 0.0
    %957 = vmatprep.subr.mxu0 0.0
    %958 = vmatpush2.xpose.msra.mxu0 0.0
    %959 = vmatprep.subr.mxu0 0.0
    %960 = vmatpush2.xpose.msra.mxu0 0.0
    %961 = vmatprep.subr.mxu0 0.0
    %962 = vmatpush2.xpose.msra.mxu0 0.0
    %963 = vmatprep.subr.mxu0 0.0
    %964 = vmatpush2.xpose.msra.mxu0 0.0
    %965 = vmatprep.subr.mxu0 0.0
    %966 = vmatpush2.xpose.msra.mxu0 0.0
    %967 = vmatprep.subr.mxu0 0.0
    %968 = vmatpush2.xpose.msra.mxu0 0.0
    %969 = vmatprep.subr.mxu0 0.0
    %970 = vmatpush2.xpose.msra.mxu0 0.0
    %971 = vmatprep.subr.mxu0 0.0
    %972 = vmatpush2.xpose.msra.mxu0 0.0
    %973 = vmatprep.subr.mxu0 0.0
    %974 = vmatpush2.xpose.msra.mxu0 0.0
    %975 = vmatprep.subr.mxu0 0.0
    %976 = vmatpush2.xpose.msra.mxu0 0.0
    %977 = vmatprep.subr.mxu0 0.0
    %978 = vmatpush2.xpose.msra.mxu0 0.0
    %979 = vmatprep.subr.mxu0 0.0
    %980 = vmatpush2.xpose.msra.mxu0 0.0
    %981 = vmatprep.subr.mxu0 0.0
    %982 = vmatpush2.xpose.msra.mxu0 0.0
    %983 = vmatprep.subr.mxu0 0.0
    %984 = vmatpush2.xpose.msra.mxu0 0.0
    %985 = vmatprep.subr.mxu0 0.0
    %986 = vmatpush2.xpose.msra.mxu0 0.0
    %987 = vmatprep.mubr.f32.mxu0 0.0
    %988 = vmatmul.mubr.f32.gmra.mxu0 %v917
    %v989 = vpop.f32.mrf.mxu0
    %v990 = vadd.f32 0.0, %v989
    %v991 = vpop.f32.mrf.mxu0
    %992 = vdwg.mxu0
    %v993 = vmul.f32 %v990, 0.17677669
    %vm994 = vcmask 130048
    %v995 = vsel %vm994, %v993, -inf
    %996 = vmax.xlane.f32.xlu0 %v995
    %v997 = vpop.xlane.xlu0 %996
    %v998 = vsub.f32 %v993, %v997
    %v999 = vmul.f32 %v998, 1.442695
    %v1000 = vpow.pop %v999
    %v1001 = vsel %vm994, %v1000, 0.0
    %1002 = vadd.xlane.f32.xlu0 %v1001
    %v1003 = vpop.xlane.xlu0 %1002
    %v1004 = vrcp.pop %v1003
    %v1005 = vmul.f32 %v1000, %v1004
    %1006 = vrot.lane.b32.xlu0 %v892, 64
    %v1007 = vpop.permute.xlu0 %1006
    %1008 = vrot.lane.b32.xlu0 %v897, 64
    %v1009 = vpop.permute.xlu0 %1008
    %v1013 = vsel %vm994, %v1005, 0
    %1015 = vmatprep.subr.mxu0 0.0
    %1016 = vmatpush1.msra.mxu0 0.0
    %1017 = vmatprep.subr.mxu0 0.0
    %1018 = vmatpush1.msra.mxu0 0.0
    %1019 = vmatprep.subr.mxu0 0.0
    %1020 = vmatpush1.msra.mxu0 0.0
    %1021 = vmatprep.subr.mxu0 0.0
    %1022 = vmatpush1.msra.mxu0 0.0
    %1023 = vmatprep.subr.mxu0 0.0
    %1024 = vmatpush1.msra.mxu0 0.0
    %1025 = vmatprep.subr.mxu0 0.0
    %1026 = vmatpush1.msra.mxu0 0.0
    %1027 = vmatprep.subr.mxu0 0.0
    %1028 = vmatpush1.msra.mxu0 0.0
    %1029 = vmatprep.subr.mxu0 0.0
    %1030 = vmatpush1.msra.mxu0 0.0
    %1031 = vmatprep.subr.mxu0 0.0
    %1032 = vmatpush1.msra.mxu0 0.0
    %1033 = vmatprep.subr.mxu0 0.0
    %1034 = vmatpush1.msra.mxu0 0.0
    %1035 = vmatprep.subr.mxu0 0.0
    %1036 = vmatpush1.msra.mxu0 0.0
    %1037 = vmatprep.subr.mxu0 0.0
    %1038 = vmatpush1.msra.mxu0 0.0
    %1039 = vmatprep.subr.mxu0 0.0
    %1040 = vmatpush1.msra.mxu0 0.0
    %1041 = vmatprep.subr.mxu0 0.0
    %1042 = vmatpush1.msra.mxu0 0.0
    %1043 = vmatprep.subr.mxu0 0.0
    %1044 = vmatpush1.msra.mxu0 %v1009
    %1045 = vmatprep.subr.mxu0 0.0
    %1046 = vmatpush1.msra.mxu0 %v1007
    %1047 = vmatprep.subr.mxu0 0.0
    %1048 = vmatpush2.msra.mxu0 0.0
    %1049 = vmatprep.subr.mxu0 0.0
    %1050 = vmatpush2.msra.mxu0 0.0
    %1051 = vmatprep.subr.mxu0 0.0
    %1052 = vmatpush2.msra.mxu0 0.0
    %1053 = vmatprep.subr.mxu0 0.0
    %1054 = vmatpush2.msra.mxu0 0.0
    %1055 = vmatprep.subr.mxu0 0.0
    %1056 = vmatpush2.msra.mxu0 0.0
    %1057 = vmatprep.subr.mxu0 0.0
    %1058 = vmatpush2.msra.mxu0 0.0
    %1059 = vmatprep.subr.mxu0 0.0
    %1060 = vmatpush2.msra.mxu0 0.0
    %1061 = vmatprep.subr.mxu0 0.0
    %1062 = vmatpush2.msra.mxu0 0.0
    %1063 = vmatprep.subr.mxu0 0.0
    %1064 = vmatpush2.msra.mxu0 0.0
    %1065 = vmatprep.subr.mxu0 0.0
    %1066 = vmatpush2.msra.mxu0 0.0
    %1067 = vmatprep.subr.mxu0 0.0
    %1068 = vmatpush2.msra.mxu0 0.0
    %1069 = vmatprep.subr.mxu0 0.0
    %1070 = vmatpush2.msra.mxu0 0.0
    %1071 = vmatprep.subr.mxu0 0.0
    %1072 = vmatpush2.msra.mxu0 0.0
    %1073 = vmatprep.subr.mxu0 0.0
    %1074 = vmatpush2.msra.mxu0 0.0
    %1075 = vmatprep.subr.mxu0 0.0
    %1076 = vmatpush2.msra.mxu0 0.0
    %1077 = vmatprep.subr.mxu0 0.0
    %1078 = vmatpush2.msra.mxu0 0.0
    %1079 = vmatprep.mubr.f32.mxu0 0.0
    %1080 = vmatmul.mubr.f32.gmra.mxu0 %v1013
    %v1081 = vpop.f32.mrf.mxu0
    %v1082 = vadd.f32 0.0, %v1081
    %v1083 = vpop.f32.mrf.mxu0
    %1084 = vdwg.mxu0
    %1087 = vrot.lane.b32.xlu0 %v902, 96
    %v1088 = vpop.permute.xlu0 %1087
    %1089 = vrot.lane.b32.xlu0 %v907, 96
    %v1090 = vpop.permute.xlu0 %1089
    %v1092 = vsel %vm163, %v808, 0
    %v1094 = vsel %vm163, %v1088, 0
    %v1096 = vsel %vm163, %v1090, 0
    %1098 = vmatprep.subr.mxu0 0.0
    %1099 = vmatpush1.xpose.msra.mxu0 0.0
    %1100 = vmatprep.subr.mxu0 0.0
    %1101 = vmatpush1.xpose.msra.mxu0 0.0
    %1102 = vmatprep.subr.mxu0 0.0
    %1103 = vmatpush1.xpose.msra.mxu0 0.0
    %1104 = vmatprep.subr.mxu0 0.0
    %1105 = vmatpush1.xpose.msra.mxu0 0.0
    %1106 = vmatprep.subr.mxu0 0.0
    %1107 = vmatpush1.xpose.msra.mxu0 0.0
    %1108 = vmatprep.subr.mxu0 0.0
    %1109 = vmatpush1.xpose.msra.mxu0 0.0
    %1110 = vmatprep.subr.mxu0 0.0
    %1111 = vmatpush1.xpose.msra.mxu0 0.0
    %1112 = vmatprep.subr.mxu0 0.0
    %1113 = vmatpush1.xpose.msra.mxu0 0.0
    %1114 = vmatprep.subr.mxu0 0.0
    %1115 = vmatpush1.xpose.msra.mxu0 0.0
    %1116 = vmatprep.subr.mxu0 0.0
    %1117 = vmatpush1.xpose.msra.mxu0 0.0
    %1118 = vmatprep.subr.mxu0 0.0
    %1119 = vmatpush1.xpose.msra.mxu0 0.0
    %1120 = vmatprep.subr.mxu0 0.0
    %1121 = vmatpush1.xpose.msra.mxu0 0.0
    %1122 = vmatprep.subr.mxu0 0.0
    %1123 = vmatpush1.xpose.msra.mxu0 0.0
    %1124 = vmatprep.subr.mxu0 0.0
    %1125 = vmatpush1.xpose.msra.mxu0 0.0
    %1126 = vmatprep.subr.mxu0 0.0
    %1127 = vmatpush1.xpose.msra.mxu0 %v1096
    %1128 = vmatprep.subr.mxu0 0.0
    %1129 = vmatpush1.xpose.msra.mxu0 %v1094
    %1130 = vmatprep.subr.mxu0 0.0
    %1131 = vmatpush2.xpose.msra.mxu0 0.0
    %1132 = vmatprep.subr.mxu0 0.0
    %1133 = vmatpush2.xpose.msra.mxu0 0.0
    %1134 = vmatprep.subr.mxu0 0.0
    %1135 = vmatpush2.xpose.msra.mxu0 0.0
    %1136 = vmatprep.subr.mxu0 0.0
    %1137 = vmatpush2.xpose.msra.mxu0 0.0
    %1138 = vmatprep.subr.mxu0 0.0
    %1139 = vmatpush2.xpose.msra.mxu0 0.0
    %1140 = vmatprep.subr.mxu0 0.0
    %1141 = vmatpush2.xpose.msra.mxu0 0.0
    %1142 = vmatprep.subr.mxu0 0.0
    %1143 = vmatpush2.xpose.msra.mxu0 0.0
    %1144 = vmatprep.subr.mxu0 0.0
    %1145 = vmatpush2.xpose.msra.mxu0 0.0
    %1146 = vmatprep.subr.mxu0 0.0
    %1147 = vmatpush2.xpose.msra.mxu0 0.0
    %1148 = vmatprep.subr.mxu0 0.0
    %1149 = vmatpush2.xpose.msra.mxu0 0.0
    %1150 = vmatprep.subr.mxu0 0.0
    %1151 = vmatpush2.xpose.msra.mxu0 0.0
    %1152 = vmatprep.subr.mxu0 0.0
    %1153 = vmatpush2.xpose.msra.mxu0 0.0
    %1154 = vmatprep.subr.mxu0 0.0
    %1155 = vmatpush2.xpose.msra.mxu0 0.0
    %1156 = vmatprep.subr.mxu0 0.0
    %1157 = vmatpush2.xpose.msra.mxu0 0.0
    %1158 = vmatprep.subr.mxu0 0.0
    %1159 = vmatpush2.xpose.msra.mxu0 0.0
    %1160 = vmatprep.subr.mxu0 0.0
    %1161 = vmatpush2.xpose.msra.mxu0 0.0
    %1162 = vmatprep.mubr.f32.mxu0 0.0
    %1163 = vmatmul.mubr.f32.gmra.mxu0 %v1092
    %v1164 = vpop.f32.mrf.mxu0
    %v1165 = vadd.f32 0.0, %v1164
    %v1166 = vpop.f32.mrf.mxu0
    %1167 = vdwg.mxu0
    %v1168 = vmul.f32 %v1165, 0.17677669
    %v1169 = vsel %vm994, %v1168, -inf
    %1170 = vmax.xlane.f32.xlu0 %v1169
    %v1171 = vpop.xlane.xlu0 %1170
    %v1172 = vsub.f32 %v1168, %v1171
    %v1173 = vmul.f32 %v1172, 1.442695
    %v1174 = vpow.pop %v1173
    %v1175 = vsel %vm994, %v1174, 0.0
    %1176 = vadd.xlane.f32.xlu0 %v1175
    %v1177 = vpop.xlane.xlu0 %1176
    %v1178 = vrcp.pop %v1177
    %v1179 = vmul.f32 %v1174, %v1178
    %1180 = vrot.lane.b32.xlu0 %v902, 64
    %v1181 = vpop.permute.xlu0 %1180
    %1182 = vrot.lane.b32.xlu0 %v907, 64
    %v1183 = vpop.permute.xlu0 %1182
    %v1187 = vsel %vm994, %v1179, 0
    %1189 = vmatprep.subr.mxu0 0.0
    %1190 = vmatpush1.msra.mxu0 0.0
    %1191 = vmatprep.subr.mxu0 0.0
    %1192 = vmatpush1.msra.mxu0 0.0
    %1193 = vmatprep.subr.mxu0 0.0
    %1194 = vmatpush1.msra.mxu0 0.0
    %1195 = vmatprep.subr.mxu0 0.0
    %1196 = vmatpush1.msra.mxu0 0.0
    %1197 = vmatprep.subr.mxu0 0.0
    %1198 = vmatpush1.msra.mxu0 0.0
    %1199 = vmatprep.subr.mxu0 0.0
    %1200 = vmatpush1.msra.mxu0 0.0
    %1201 = vmatprep.subr.mxu0 0.0
    %1202 = vmatpush1.msra.mxu0 0.0
    %1203 = vmatprep.subr.mxu0 0.0
    %1204 = vmatpush1.msra.mxu0 0.0
    %1205 = vmatprep.subr.mxu0 0.0
    %1206 = vmatpush1.msra.mxu0 0.0
    %1207 = vmatprep.subr.mxu0 0.0
    %1208 = vmatpush1.msra.mxu0 0.0
    %1209 = vmatprep.subr.mxu0 0.0
    %1210 = vmatpush1.msra.mxu0 0.0
    %1211 = vmatprep.subr.mxu0 0.0
    %1212 = vmatpush1.msra.mxu0 0.0
    %1213 = vmatprep.subr.mxu0 0.0
    %1214 = vmatpush1.msra.mxu0 0.0
    %1215 = vmatprep.subr.mxu0 0.0
    %1216 = vmatpush1.msra.mxu0 0.0
    %1217 = vmatprep.subr.mxu0 0.0
    %1218 = vmatpush1.msra.mxu0 %v1183
    %1219 = vmatprep.subr.mxu0 0.0
    %1220 = vmatpush1.msra.mxu0 %v1181
    %1221 = vmatprep.subr.mxu0 0.0
    %1222 = vmatpush2.msra.mxu0 0.0
    %1223 = vmatprep.subr.mxu0 0.0
    %1224 = vmatpush2.msra.mxu0 0.0
    %1225 = vmatprep.subr.mxu0 0.0
    %1226 = vmatpush2.msra.mxu0 0.0
    %1227 = vmatprep.subr.mxu0 0.0
    %1228 = vmatpush2.msra.mxu0 0.0
    %1229 = vmatprep.subr.mxu0 0.0
    %1230 = vmatpush2.msra.mxu0 0.0
    %1231 = vmatprep.subr.mxu0 0.0
    %1232 = vmatpush2.msra.mxu0 0.0
    %1233 = vmatprep.subr.mxu0 0.0
    %1234 = vmatpush2.msra.mxu0 0.0
    %1235 = vmatprep.subr.mxu0 0.0
    %1236 = vmatpush2.msra.mxu0 0.0
    %1237 = vmatprep.subr.mxu0 0.0
    %1238 = vmatpush2.msra.mxu0 0.0
    %1239 = vmatprep.subr.mxu0 0.0
    %1240 = vmatpush2.msra.mxu0 0.0
    %1241 = vmatprep.subr.mxu0 0.0
    %1242 = vmatpush2.msra.mxu0 0.0
    %1243 = vmatprep.subr.mxu0 0.0
    %1244 = vmatpush2.msra.mxu0 0.0
    %1245 = vmatprep.subr.mxu0 0.0
    %1246 = vmatpush2.msra.mxu0 0.0
    %1247 = vmatprep.subr.mxu0 0.0
    %1248 = vmatpush2.msra.mxu0 0.0
    %1249 = vmatprep.subr.mxu0 0.0
    %1250 = vmatpush2.msra.mxu0 0.0
    %1251 = vmatprep.subr.mxu0 0.0
    %1252 = vmatpush2.msra.mxu0 0.0
    %1253 = vmatprep.mubr.f32.mxu0 0.0
    %1254 = vmatmul.mubr.f32.gmra.mxu0 %v1187
    %v1255 = vpop.f32.mrf.mxu0
    %v1256 = vadd.f32 0.0, %v1255
    %v1257 = vpop.f32.mrf.mxu0
    %1258 = vdwg.mxu0
    %v1260 = vsel %vm163, %v1082, 0
    %v1263 = vsel %vm163, %v1256, 0
    %1265 = vmatprep.subr.mxu0 0.0
    %1266 = vmatpush1.msra.mxu0 0.0
    %1267 = vmatprep.subr.mxu0 0.0
    %1268 = vmatpush1.msra.mxu0 0.0
    %1269 = vmatprep.subr.mxu0 0.0
    %1270 = vmatpush1.msra.mxu0 0.0
    %1271 = vmatprep.subr.mxu0 0.0
    %1272 = vmatpush1.msra.mxu0 0.0
    %1273 = vmatprep.subr.mxu0 0.0
    %1274 = vmatpush1.msra.mxu0 0.0
    %1275 = vmatprep.subr.mxu0 0.0
    %1276 = vmatpush1.msra.mxu0 0.0
    %1277 = vmatprep.subr.mxu0 0.0
    %1278 = vmatpush1.msra.mxu0 0.0
    %1279 = vmatprep.subr.mxu0 0.0
    %1280 = vmatpush1.msra.mxu0 0.0
    %1281 = vmatprep.subr.mxu0 0.0
    %1282 = vmatpush1.msra.mxu0 0.0
    %1283 = vmatprep.subr.mxu0 0.0
    %1284 = vmatpush1.msra.mxu0 0.0
    %1285 = vmatprep.subr.mxu0 0.0
    %1286 = vmatpush1.msra.mxu0 0.0
    %1287 = vmatprep.subr.mxu0 0.0
    %1288 = vmatpush1.msra.mxu0 0.0
    %1289 = vmatprep.subr.mxu0 0.0
    %1290 = vmatpush1.msra.mxu0 %v721
    %1291 = vmatprep.subr.mxu0 0.0
    %1292 = vmatpush1.msra.mxu0 %v720
    %1293 = vmatprep.subr.mxu0 0.0
    %1294 = vmatpush1.msra.mxu0 %v719
    %1295 = vmatprep.subr.mxu0 0.0
    %1296 = vmatpush1.msra.mxu0 %v718
    %1297 = vmatprep.subr.mxu0 0.0
    %1298 = vmatpush2.msra.mxu0 0.0
    %1299 = vmatprep.subr.mxu0 0.0
    %1300 = vmatpush2.msra.mxu0 0.0
    %1301 = vmatprep.subr.mxu0 0.0
    %1302 = vmatpush2.msra.mxu0 0.0
    %1303 = vmatprep.subr.mxu0 0.0
    %1304 = vmatpush2.msra.mxu0 0.0
    %1305 = vmatprep.subr.mxu0 0.0
    %1306 = vmatpush2.msra.mxu0 0.0
    %1307 = vmatprep.subr.mxu0 0.0
    %1308 = vmatpush2.msra.mxu0 0.0
    %1309 = vmatprep.subr.mxu0 0.0
    %1310 = vmatpush2.msra.mxu0 0.0
    %1311 = vmatprep.subr.mxu0 0.0
    %1312 = vmatpush2.msra.mxu0 0.0
    %1313 = vmatprep.subr.mxu0 0.0
    %1314 = vmatpush2.msra.mxu0 0.0
    %1315 = vmatprep.subr.mxu0 0.0
    %1316 = vmatpush2.msra.mxu0 0.0
    %1317 = vmatprep.subr.mxu0 0.0
    %1318 = vmatpush2.msra.mxu0 0.0
    %1319 = vmatprep.subr.mxu0 0.0
    %1320 = vmatpush2.msra.mxu0 0.0
    %1321 = vmatprep.subr.mxu0 0.0
    %1322 = vmatpush2.msra.mxu0 0.0
    %1323 = vmatprep.subr.mxu0 0.0
    %1324 = vmatpush2.msra.mxu0 0.0
    %1325 = vmatprep.subr.mxu0 0.0
    %1326 = vmatpush2.msra.mxu0 0.0
    %1327 = vmatprep.subr.mxu0 0.0
    %1328 = vmatpush2.msra.mxu0 0.0
    %1329 = vmatprep.mubr.f32.mxu0 0.0
    %1330 = vmatmul.mubr.f32.gmra.mxu0 %v1260
    %v1331 = vpop.f32.mrf.mxu0
    %v1332 = vadd.f32 0.0, %v1331
    %v1333 = vpop.f32.mrf.mxu0
    %1334 = vmatprep.mubr.f32.mxu0 0.0
    %1335 = vmatmul.mubr.f32.gmra.mxu0 %v1263
    %v1336 = vpop.f32.mrf.mxu0
    %v1337 = vadd.f32 0.0, %v1336
    %v1338 = vpop.f32.mrf.mxu0
    %1339 = vdwg.mxu0
    %v1340 = vlaneseq
    %v1341 = vshrl.u32 %v1340, 7
    %v1342 = vsub.s32 5, %v1341
    %v1343 = vrot.slane %v36, %v1342
    %1345 = vrot.lane.b32.xlu0 %v1343, 96
    %v1346 = vpop.permute.xlu0 %1345
    %v1348 = vadd.f32 %v1332, %v1346
    %v1349 = vadd.f32 %v1337, %v1346
    %1352 = vrot.lane.b32.xlu0 %v1348, 32
    %v1353 = vpop.permute.xlu0 %1352
    %1354 = vrot.lane.b32.xlu0 %v1349, 32
    %v1355 = vpop.permute.xlu0 %1354
    %v1358 = vadd.f32 %v716, %v1353
    %v1359 = vadd.f32 %v717, %v1355
    %v1360 = vsel %vm163, %v1358, 0.0
    %1361 = vadd.xlane.f32.xlu0 %v1360
    %v1362 = vpop.xlane.xlu0 %1361
    %v1363 = vsel %vm163, %v1359, 0.0
    %1364 = vadd.xlane.f32.xlu0 %v1363
    %v1365 = vpop.xlane.xlu0 %1364
    %v1366 = vmul.f32 %v1362, %v685
    %v1367 = vmul.f32 %v1365, %v685
    %v1368 = vsub.f32 %v1358, %v1366
    %v1369 = vsub.f32 %v1359, %v1367
    %v1370 = vmul.f32 %v1368, %v1368
    %v1371 = vmul.f32 %v1369, %v1369
    %v1372 = vsel %vm163, %v1370, 0.0
    %1373 = vadd.xlane.f32.xlu0 %v1372
    %v1374 = vpop.xlane.xlu0 %1373
    %v1375 = vsel %vm163, %v1371, 0.0
    %1376 = vadd.xlane.f32.xlu0 %v1375
    %v1377 = vpop.xlane.xlu0 %1376
    %v1378 = vmul.f32 %v1374, %v685
    %v1379 = vmul.f32 %v1377, %v685
    %v1380 = vadd.f32 %v1378, 1e-05
    %v1381 = vadd.f32 %v1379, 1e-05
    %v1382 = vrsqrt.pop %v1380
    %v1383 = vrsqrt.pop %v1381
    %v1384 = vmul.f32 %v1368, %v1382
    %v1385 = vmul.f32 %v1369, %v1383
    %v1386 = vlaneseq
    %v1387 = vshrl.u32 %v1386, 7
    %v1388 = vsub.s32 2, %v1387
    %v1389 = vrot.slane %v37, %v1388
    %v1390 = vmul.f32 %v1384, %v1389
    %v1391 = vmul.f32 %v1385, %v1389
    %v1392 = vlaneseq
    %v1393 = vshrl.u32 %v1392, 7
    %v1394 = vsub.s32 3, %v1393
    %v1395 = vrot.slane %v37, %v1394
    %v1396 = vadd.f32 %v1390, %v1395
    %v1397 = vadd.f32 %v1391, %v1395
    %v1398 = vld [vmem:[%s6] sm:$0xff]
    %v1399 = vld [vmem:[%s6 + $0x8] sm:$0xff]
    %v1400 = vld [vmem:[%s6 + $0x10] sm:$0xff]
    %v1401 = vld [vmem:[%s6 + $0x18] sm:$0xff]
    %v1402 = vlaneseq
    %v1403 = vshrl.u32 %v1402, 7
    %v1404 = vsub.s32 6, %v1403
    %v1405 = vrot.slane %v36, %v1404
    %v1407 = vsel %vm163, %v1396, 0
    %v1410 = vsel %vm163, %v1397, 0
    %1412 = vmatprep.subr.mxu0 0.0
    %1413 = vmatpush1.msra.mxu0 0.0
    %1414 = vmatprep.subr.mxu0 0.0
    %1415 = vmatpush1.msra.mxu0 0.0
    %1416 = vmatprep.subr.mxu0 0.0
    %1417 = vmatpush1.msra.mxu0 0.0
    %1418 = vmatprep.subr.mxu0 0.0
    %1419 = vmatpush1.msra.mxu0 0.0
    %1420 = vmatprep.subr.mxu0 0.0
    %1421 = vmatpush1.msra.mxu0 0.0
    %1422 = vmatprep.subr.mxu0 0.0
    %1423 = vmatpush1.msra.mxu0 0.0
    %1424 = vmatprep.subr.mxu0 0.0
    %1425 = vmatpush1.msra.mxu0 0.0
    %1426 = vmatprep.subr.mxu0 0.0
    %1427 = vmatpush1.msra.mxu0 0.0
    %1428 = vmatprep.subr.mxu0 0.0
    %1429 = vmatpush1.msra.mxu0 0.0
    %1430 = vmatprep.subr.mxu0 0.0
    %1431 = vmatpush1.msra.mxu0 0.0
    %1432 = vmatprep.subr.mxu0 0.0
    %1433 = vmatpush1.msra.mxu0 0.0
    %1434 = vmatprep.subr.mxu0 0.0
    %1435 = vmatpush1.msra.mxu0 0.0
    %1436 = vmatprep.subr.mxu0 0.0
    %1437 = vmatpush1.msra.mxu0 %v1401
    %1438 = vmatprep.subr.mxu0 0.0
    %1439 = vmatpush1.msra.mxu0 %v1400
    %1440 = vmatprep.subr.mxu0 0.0
    %1441 = vmatpush1.msra.mxu0 %v1399
    %1442 = vmatprep.subr.mxu0 0.0
    %1443 = vmatpush1.msra.mxu0 %v1398
    %1444 = vmatprep.subr.mxu0 0.0
    %1445 = vmatpush2.msra.mxu0 0.0
    %1446 = vmatprep.subr.mxu0 0.0
    %1447 = vmatpush2.msra.mxu0 0.0
    %1448 = vmatprep.subr.mxu0 0.0
    %1449 = vmatpush2.msra.mxu0 0.0
    %1450 = vmatprep.subr.mxu0 0.0
    %1451 = vmatpush2.msra.mxu0 0.0
    %1452 = vmatprep.subr.mxu0 0.0
    %1453 = vmatpush2.msra.mxu0 0.0
    %1454 = vmatprep.subr.mxu0 0.0
    %1455 = vmatpush2.msra.mxu0 0.0
    %1456 = vmatprep.subr.mxu0 0.0
    %1457 = vmatpush2.msra.mxu0 0.0
    %1458 = vmatprep.subr.mxu0 0.0
    %1459 = vmatpush2.msra.mxu0 0.0
    %1460 = vmatprep.subr.mxu0 0.0
    %1461 = vmatpush2.msra.mxu0 0.0
    %1462 = vmatprep.subr.mxu0 0.0
    %1463 = vmatpush2.msra.mxu0 0.0
    %1464 = vmatprep.subr.mxu0 0.0
    %1465 = vmatpush2.msra.mxu0 0.0
    %1466 = vmatprep.subr.mxu0 0.0
    %1467 = vmatpush2.msra.mxu0 0.0
    %1468 = vmatprep.subr.mxu0 0.0
    %1469 = vmatpush2.msra.mxu0 0.0
    %1470 = vmatprep.subr.mxu0 0.0
    %1471 = vmatpush2.msra.mxu0 0.0
    %1472 = vmatprep.subr.mxu0 0.0
    %1473 = vmatpush2.msra.mxu0 0.0
    %1474 = vmatprep.subr.mxu0 0.0
    %1475 = vmatpush2.msra.mxu0 0.0
    %1476 = vmatprep.mubr.f32.mxu0 0.0
    %1477 = vmatmul.mubr.f32.gmra.mxu0 %v1407
    %v1478 = vpop.f32.mrf.mxu0
    %v1479 = vadd.f32 %v1405, %v1478
    %v1480 = vpop.f32.mrf.mxu0
    %1481 = vmatprep.mubr.f32.mxu0 0.0
    %1482 = vmatmul.mubr.f32.gmra.mxu0 %v1410
    %v1483 = vpop.f32.mrf.mxu0
    %v1484 = vadd.f32 %v1405, %v1483
    %v1485 = vpop.f32.mrf.mxu0
    %1486 = vdwg.mxu0
    %v1487 = vmax.f32 %v1479, 0.0
    %v1488 = vmax.f32 %v1484, 0.0
    %v1489 = vld [vmem:[%s7] sm:$0xff]
    %v1490 = vld [vmem:[%s7 + $0x8] sm:$0xff]
    %v1491 = vld [vmem:[%s7 + $0x10] sm:$0xff]
    %v1492 = vld [vmem:[%s7 + $0x18] sm:$0xff]
    %v1493 = vld [vmem:[%s7 + $0x20] sm:$0xff]
    %v1494 = vld [vmem:[%s7 + $0x28] sm:$0xff]
    %v1495 = vld [vmem:[%s7 + $0x30] sm:$0xff]
    %v1496 = vld [vmem:[%s7 + $0x38] sm:$0xff]
    %v1498 = vsel %vm54, %v1487, 0
    %v1501 = vsel %vm54, %v1488, 0
    %1503 = vmatprep.subr.mxu0 0.0
    %1504 = vmatpush1.msra.mxu0 0.0
    %1505 = vmatprep.subr.mxu0 0.0
    %1506 = vmatpush1.msra.mxu0 0.0
    %1507 = vmatprep.subr.mxu0 0.0
    %1508 = vmatpush1.msra.mxu0 0.0
    %1509 = vmatprep.subr.mxu0 0.0
    %1510 = vmatpush1.msra.mxu0 0.0
    %1511 = vmatprep.subr.mxu0 0.0
    %1512 = vmatpush1.msra.mxu0 0.0
    %1513 = vmatprep.subr.mxu0 0.0
    %1514 = vmatpush1.msra.mxu0 0.0
    %1515 = vmatprep.subr.mxu0 0.0
    %1516 = vmatpush1.msra.mxu0 0.0
    %1517 = vmatprep.subr.mxu0 0.0
    %1518 = vmatpush1.msra.mxu0 0.0
    %1519 = vmatprep.subr.mxu0 0.0
    %1520 = vmatpush1.msra.mxu0 %v1496
    %1521 = vmatprep.subr.mxu0 0.0
    %1522 = vmatpush1.msra.mxu0 %v1495
    %1523 = vmatprep.subr.mxu0 0.0
    %1524 = vmatpush1.msra.mxu0 %v1494
    %1525 = vmatprep.subr.mxu0 0.0
    %1526 = vmatpush1.msra.mxu0 %v1493
    %1527 = vmatprep.subr.mxu0 0.0
    %1528 = vmatpush1.msra.mxu0 %v1492
    %1529 = vmatprep.subr.mxu0 0.0
    %1530 = vmatpush1.msra.mxu0 %v1491
    %1531 = vmatprep.subr.mxu0 0.0
    %1532 = vmatpush1.msra.mxu0 %v1490
    %1533 = vmatprep.subr.mxu0 0.0
    %1534 = vmatpush1.msra.mxu0 %v1489
    %1535 = vmatprep.subr.mxu0 0.0
    %1536 = vmatpush2.msra.mxu0 0.0
    %1537 = vmatprep.subr.mxu0 0.0
    %1538 = vmatpush2.msra.mxu0 0.0
    %1539 = vmatprep.subr.mxu0 0.0
    %1540 = vmatpush2.msra.mxu0 0.0
    %1541 = vmatprep.subr.mxu0 0.0
    %1542 = vmatpush2.msra.mxu0 0.0
    %1543 = vmatprep.subr.mxu0 0.0
    %1544 = vmatpush2.msra.mxu0 0.0
    %1545 = vmatprep.subr.mxu0 0.0
    %1546 = vmatpush2.msra.mxu0 0.0
    %1547 = vmatprep.subr.mxu0 0.0
    %1548 = vmatpush2.msra.mxu0 0.0
    %1549 = vmatprep.subr.mxu0 0.0
    %1550 = vmatpush2.msra.mxu0 0.0
    %1551 = vmatprep.subr.mxu0 0.0
    %1552 = vmatpush2.msra.mxu0 0.0
    %1553 = vmatprep.subr.mxu0 0.0
    %1554 = vmatpush2.msra.mxu0 0.0
    %1555 = vmatprep.subr.mxu0 0.0
    %1556 = vmatpush2.msra.mxu0 0.0
    %1557 = vmatprep.subr.mxu0 0.0
    %1558 = vmatpush2.msra.mxu0 0.0
    %1559 = vmatprep.subr.mxu0 0.0
    %1560 = vmatpush2.msra.mxu0 0.0
    %1561 = vmatprep.subr.mxu0 0.0
    %1562 = vmatpush2.msra.mxu0 0.0
    %1563 = vmatprep.subr.mxu0 0.0
    %1564 = vmatpush2.msra.mxu0 0.0
    %1565 = vmatprep.subr.mxu0 0.0
    %1566 = vmatpush2.msra.mxu0 0.0
    %1567 = vmatprep.mubr.f32.mxu0 0.0
    %1568 = vmatmul.mubr.f32.gmra.mxu0 %v1498
    %v1569 = vpop.f32.mrf.mxu0
    %v1570 = vadd.f32 0.0, %v1569
    %v1571 = vpop.f32.mrf.mxu0
    %1572 = vmatprep.mubr.f32.mxu0 0.0
    %1573 = vmatmul.mubr.f32.gmra.mxu0 %v1501
    %v1574 = vpop.f32.mrf.mxu0
    %v1575 = vadd.f32 0.0, %v1574
    %v1576 = vpop.f32.mrf.mxu0
    %1577 = vdwg.mxu0
    %v1578 = vadd.f32 %v1396, %v1570
    %v1579 = vadd.f32 %v1397, %v1575
    %v1580 = vlaneseq
    %v1581 = vshrl.u32 %v1580, 7
    %v1582 = vsub.s32 7, %v1581
    %v1583 = vrot.slane %v36, %v1582
    %v1584 = vadd.f32 %v1578, %v1583
    %v1585 = vadd.f32 %v1579, %v1583
    %v1586 = vsel %vm163, %v1584, 0.0
    %1587 = vadd.xlane.f32.xlu0 %v1586
    %v1588 = vpop.xlane.xlu0 %1587
    %v1589 = vsel %vm163, %v1585, 0.0
    %1590 = vadd.xlane.f32.xlu0 %v1589
    %v1591 = vpop.xlane.xlu0 %1590
    %v1592 = vmul.f32 %v1588, %v685
    %v1593 = vmul.f32 %v1591, %v685
    %v1594 = vsub.f32 %v1584, %v1592
    %v1595 = vsub.f32 %v1585, %v1593
    %v1596 = vmul.f32 %v1594, %v1594
    %v1597 = vmul.f32 %v1595, %v1595
    %v1598 = vsel %vm163, %v1596, 0.0
    %1599 = vadd.xlane.f32.xlu0 %v1598
    %v1600 = vpop.xlane.xlu0 %1599
    %v1601 = vsel %vm163, %v1597, 0.0
    %1602 = vadd.xlane.f32.xlu0 %v1601
    %v1603 = vpop.xlane.xlu0 %1602
    %v1604 = vmul.f32 %v1600, %v685
    %v1605 = vmul.f32 %v1603, %v685
    %v1606 = vadd.f32 %v1604, 1e-05
    %v1607 = vadd.f32 %v1605, 1e-05
    %v1608 = vrsqrt.pop %v1606
    %v1609 = vrsqrt.pop %v1607
    %v1610 = vmul.f32 %v1594, %v1608
    %v1611 = vmul.f32 %v1595, %v1609
    %v1612 = vlaneseq
    %v1613 = vshrl.u32 %v1612, 7
    %v1614 = vsub.s32 4, %v1613
    %v1615 = vrot.slane %v37, %v1614
    %v1616 = vmul.f32 %v1610, %v1615
    %v1617 = vmul.f32 %v1611, %v1615
    %v1618 = vlaneseq
    %v1619 = vshrl.u32 %v1618, 7
    %v1620 = vsub.s32 5, %v1619
    %v1621 = vrot.slane %v37, %v1620
    %v1622 = vadd.f32 %v1616, %v1621
    %v1623 = vadd.f32 %v1617, %v1621
    %v1624 = vld [vmem:[%s8] sm:$0xff]
    %v1625 = vld [vmem:[%s8 + $0x8] sm:$0xff]
    %v1626 = vld [vmem:[%s8 + $0x10] sm:$0xff]
    %v1627 = vld [vmem:[%s8 + $0x18] sm:$0xff]
    %v1628 = vlaneseq
    %v1629 = vshrl.u32 %v1628, 7
    %v1630 = vsub.s32 6, %v1629
    %v1631 = vrot.slane %v37, %v1630
    %v1633 = vsel %vm163, %v1622, 0
    %v1636 = vsel %vm163, %v1623, 0
    %1638 = vmatprep.subr.mxu0 0.0
    %1639 = vmatpush1.msra.mxu0 0.0
    %1640 = vmatprep.subr.mxu0 0.0
    %1641 = vmatpush1.msra.mxu0 0.0
    %1642 = vmatprep.subr.mxu0 0.0
    %1643 = vmatpush1.msra.mxu0 0.0
    %1644 = vmatprep.subr.mxu0 0.0
    %1645 = vmatpush1.msra.mxu0 0.0
    %1646 = vmatprep.subr.mxu0 0.0
    %1647 = vmatpush1.msra.mxu0 0.0
    %1648 = vmatprep.subr.mxu0 0.0
    %1649 = vmatpush1.msra.mxu0 0.0
    %1650 = vmatprep.subr.mxu0 0.0
    %1651 = vmatpush1.msra.mxu0 0.0
    %1652 = vmatprep.subr.mxu0 0.0
    %1653 = vmatpush1.msra.mxu0 0.0
    %1654 = vmatprep.subr.mxu0 0.0
    %1655 = vmatpush1.msra.mxu0 0.0
    %1656 = vmatprep.subr.mxu0 0.0
    %1657 = vmatpush1.msra.mxu0 0.0
    %1658 = vmatprep.subr.mxu0 0.0
    %1659 = vmatpush1.msra.mxu0 0.0
    %1660 = vmatprep.subr.mxu0 0.0
    %1661 = vmatpush1.msra.mxu0 0.0
    %1662 = vmatprep.subr.mxu0 0.0
    %1663 = vmatpush1.msra.mxu0 %v1627
    %1664 = vmatprep.subr.mxu0 0.0
    %1665 = vmatpush1.msra.mxu0 %v1626
    %1666 = vmatprep.subr.mxu0 0.0
    %1667 = vmatpush1.msra.mxu0 %v1625
    %1668 = vmatprep.subr.mxu0 0.0
    %1669 = vmatpush1.msra.mxu0 %v1624
    %1670 = vmatprep.subr.mxu0 0.0
    %1671 = vmatpush2.msra.mxu0 0.0
    %1672 = vmatprep.subr.mxu0 0.0
    %1673 = vmatpush2.msra.mxu0 0.0
    %1674 = vmatprep.subr.mxu0 0.0
    %1675 = vmatpush2.msra.mxu0 0.0
    %1676 = vmatprep.subr.mxu0 0.0
    %1677 = vmatpush2.msra.mxu0 0.0
    %1678 = vmatprep.subr.mxu0 0.0
    %1679 = vmatpush2.msra.mxu0 0.0
    %1680 = vmatprep.subr.mxu0 0.0
    %1681 = vmatpush2.msra.mxu0 0.0
    %1682 = vmatprep.subr.mxu0 0.0
    %1683 = vmatpush2.msra.mxu0 0.0
    %1684 = vmatprep.subr.mxu0 0.0
    %1685 = vmatpush2.msra.mxu0 0.0
    %1686 = vmatprep.subr.mxu0 0.0
    %1687 = vmatpush2.msra.mxu0 0.0
    %1688 = vmatprep.subr.mxu0 0.0
    %1689 = vmatpush2.msra.mxu0 0.0
    %1690 = vmatprep.subr.mxu0 0.0
    %1691 = vmatpush2.msra.mxu0 0.0
    %1692 = vmatprep.subr.mxu0 0.0
    %1693 = vmatpush2.msra.mxu0 0.0
    %1694 = vmatprep.subr.mxu0 0.0
    %1695 = vmatpush2.msra.mxu0 0.0
    %1696 = vmatprep.subr.mxu0 0.0
    %1697 = vmatpush2.msra.mxu0 0.0
    %1698 = vmatprep.subr.mxu0 0.0
    %1699 = vmatpush2.msra.mxu0 0.0
    %1700 = vmatprep.subr.mxu0 0.0
    %1701 = vmatpush2.msra.mxu0 0.0
    %1702 = vmatprep.mubr.f32.mxu0 0.0
    %1703 = vmatmul.mubr.f32.gmra.mxu0 %v1633
    %v1704 = vpop.f32.mrf.mxu0
    %v1705 = vadd.f32 %v1631, %v1704
    %v1706 = vpop.f32.mrf.mxu0
    %1707 = vmatprep.mubr.f32.mxu0 0.0
    %1708 = vmatmul.mubr.f32.gmra.mxu0 %v1636
    %v1709 = vpop.f32.mrf.mxu0
    %v1710 = vadd.f32 %v1631, %v1709
    %v1711 = vpop.f32.mrf.mxu0
    %1712 = vdwg.mxu0
    %1713 = vst [vmem:[#allocation2] sm:$0xff] %v1705
    %1714 = vst [vmem:[#allocation2 + $0x8] sm:$0xff] %v1710
    // Predicated region
    $region42: #{latex_model_forward.1} parent=1 // pred_check
      _
    $region43: #{latex_model_forward.1} parent=1 // pred_check_branch
      %1716 = sbr.rel (0) target = $region45
    $region44: #{latex_model_forward.1} parent=1 // pred_region
      %s1718 = ssub.s32 256, 256
      %1719 = vsyncadd [#allocation3], %s1718
      %s1720 = sshll.u32 [#allocation2], 4
      %s1721 = int_to_ptr.vmem [resolvable:$true] %s1720
      %1726 = dma.vmem_to_hbm [thread:$0]  %s1721, 256, %s10, [#allocation3], 128, 128, 8
    $region45: #{latex_model_forward.1} parent=1 // pred_fallthru
      _
    // Predicated region
    $region46: #{latex_model_forward.1} parent=1 // pred_check
      _
    $region47: #{latex_model_forward.1} parent=1 // pred_check_branch
      %1728 = sbr.rel (0) target = $region49
    $region48: #{latex_model_forward.1} parent=1 // pred_region
      %1729 = dma.done [#allocation3], 256
    $region49: #{latex_model_forward.1} parent=1 // pred_fallthru
      _
    %1730 = vsyncpa [#allocation3], 1

</llo_original>
